<compile_context>
chip_gen: v7x
topology: tpu7x:2x2x1
jax: 0.10.0
libtpu: 0.0.40
codegen_flags: <defaults>
</compile_context>

<pallas_src>
import functools

import numpy as np
import jax
import jax.numpy as jnp
from jax import lax
from jax.experimental import pallas as pl
from jax.experimental.pallas import tpu as pltpu

_EPS = 1e-10
_MARGIN = 50.0
_MAX_T_TILE = 512          # lane-dense (B, Tt) guide/sparse tiles


# --------------------------------------------------------------------------------------
# Kernel 1: fused ACM losses (forward_once) for one or two streams, tiled over T
# --------------------------------------------------------------------------------------
def _acm_losses_kernel(*args, n_streams):
    """grid = (num_T_tiles,).  Per-stream inputs:
       (inst_cls, cont_cls, back_cls, vid, guide_tile, sparse_tile,
        inst_feat, cont_feat, back_feat).  out_ref (n_streams, 6) lives in SMEM and is
       revisited across the T grid: guide/sparse accumulate, the rest is written at t==0."""
    out_ref = args[-1]
    t = pl.program_id(0)

    for s in range(n_streams):
        (ic_ref, cc_ref, bc_ref, vid_ref, g_ref, sp_ref,
         fi_ref, fc_ref, fb_ref) = args[9 * s: 9 * (s + 1)]

        inv_b = 1.0 / g_ref.shape[0]

        # Lane-dense (B, Tt) partial reductions (T on lanes).
        guide_part = jnp.sum(jnp.abs(g_ref[...].astype(jnp.float32))) * inv_b
        sparse_part = jnp.sum(sp_ref[...].astype(jnp.float32)) * (0.5 * inv_b)

        @pl.when(t == 0)
        def _():
            ic = ic_ref[...].astype(jnp.float32)            # (B, C+1)
            cc = cc_ref[...].astype(jnp.float32)
            bc = bc_ref[...].astype(jnp.float32)
            vid = vid_ref[...].astype(jnp.float32)          # (B, C)
            ncls = vid.shape[1]

            vid_sum = jnp.sum(vid, axis=1, keepdims=True)   # (B, 1)
            log_ic = jnp.log(ic + _EPS)
            log_cc = jnp.log(cc + _EPS)
            log_bc_bg = jnp.log(bc[:, ncls:ncls + 1] + _EPS)

            # Label tensors never materialized:
            #   inst label = [vid, 0]/sum(vid); cont label = [vid, 1]/(sum(vid)+1)
            #   back label = [0..0, 1]
            inst_loss = -jnp.sum(
                jnp.sum(log_ic[:, :ncls] * vid, axis=1, keepdims=True) / vid_sum) * inv_b
            cont_loss = -jnp.sum(
                (jnp.sum(log_cc[:, :ncls] * vid, axis=1, keepdims=True)
                 + log_cc[:, ncls:ncls + 1]) / (vid_sum + 1.0)) * inv_b
            back_loss = -jnp.sum(log_bc_bg) * inv_b

            def l2(ref):
                f = ref[...].astype(jnp.float32)
                return jnp.sqrt(jnp.sum(f * f, axis=1, keepdims=True))   # (B, 1)

            n_i, n_c, n_b = l2(fi_ref), l2(fc_ref), l2(fb_ref)
            f1 = jnp.maximum(_MARGIN - n_i + n_c, 0.0)
            f2 = jnp.maximum(_MARGIN - n_c + n_b, 0.0)
            feat_loss = jnp.sum((f1 + f2 + n_b) ** 2) * inv_b

            out_ref[s, 0] = inst_loss
            out_ref[s, 1] = cont_loss
            out_ref[s, 2] = back_loss
            out_ref[s, 3] = guide_part
            out_ref[s, 4] = feat_loss
            out_ref[s, 5] = sparse_part

        @pl.when(t > 0)
        def _():
            out_ref[s, 3] = out_ref[s, 3] + guide_part
            out_ref[s, 5] = out_ref[s, 5] + sparse_part


def acm_losses(streams):
    """streams: list of per-stream tuples
       (inst_cls, cont_cls, back_cls, vid_label, guide_in, sparse_in,
        inst_feat, cont_feat, back_feat)  ->  (n_streams, 6) float32 losses."""
    n = len(streams)
    bsz, t_len = streams[0][4].shape

    if t_len <= _MAX_T_TILE:
        tt, t_pad = t_len, t_len
    else:
        tt = _MAX_T_TILE
        t_pad = int(pl.cdiv(t_len, tt)) * tt
    n_t = t_pad // tt

    def full_spec(shape):
        return pl.BlockSpec(shape, lambda t: (0, 0))

    t_spec = pl.BlockSpec((bsz, tt), lambda t: (0, t))

    flat, in_specs = [], []
    for (ic, cc, bc, vid, g, sp, fi, fc, fb) in streams:
        if t_pad != t_len:
            # zero padding contributes 0 to both |guide| and sparse sums
            g = jnp.pad(g, ((0, 0), (0, t_pad - t_len)))
            sp = jnp.pad(sp, ((0, 0), (0, t_pad - t_len)))
        for x in (ic, cc, bc, vid):
            flat.append(x)
            in_specs.append(full_spec(x.shape))
        flat.append(g)
        in_specs.append(t_spec)
        flat.append(sp)
        in_specs.append(t_spec)
        for x in (fi, fc, fb):
            flat.append(x)
            in_specs.append(full_spec(x.shape))

    # TODO(synk): on v7x shard streams / batch across the two TensorCores with a leading
    # "parallel" grid axis + per-stream output blocks.
    return pl.pallas_call(
        functools.partial(_acm_losses_kernel, n_streams=n),
        out_shape=jax.ShapeDtypeStruct((n, 6), jnp.float32),
        grid=(n_t,),
        in_specs=in_specs,
        out_specs=pl.BlockSpec(memory_space=pltpu.MemorySpace.SMEM),
        compiler_params=pltpu.CompilerParams(
            dimension_semantics=("arbitrary",),
            vmem_limit_bytes=32 * 1024 * 1024),
    )(*flat)


# --------------------------------------------------------------------------------------
# Kernel 2 helpers: batched cosine similarity, pre-skewed anti-diagonals, wavefront DPs
# --------------------------------------------------------------------------------------
def _normalize(x):
    x = x.astype(jnp.float32)
    return x * lax.rsqrt(jnp.sum(x * x, axis=-1, keepdims=True) + 1e-12)


def _cos_bij(a, b):
    """cos similarity (B, L, L) via one batched contraction (MXU at production D)."""
    return jnp.einsum('bid,bjd->bij', _normalize(a), _normalize(b),
                      preferred_element_type=jnp.float32)


def _write_skew(sim, ref):
    """Pre-skew anti-diagonals once: ref[r, b, j] = sim[b, r-j, j] (0 outside).
    L static rolls + selects at construction instead of O(L) selects per DP step."""
    bsz, length, _ = sim.shape
    padded = jnp.concatenate(
        [sim, jnp.zeros((bsz, length - 1, length), sim.dtype)], axis=1)   # (B, 2L-1, L)
    lane = lax.broadcasted_iota(jnp.int32, padded.shape, 2)
    skew = jnp.where(lane == 0, padded, 0.0)
    for j in range(1, length):
        skew = jnp.where(lane == j, jnp.roll(padded, j, axis=1), skew)
    for r in range(2 * length - 1):
        ref[r] = skew[:, r, :]


def _shift_right_lane(x):
    """out[:, p] = x[:, p-1]; out[:, 0] = 0.  Single slice+concat (O(1) ops).
    TODO(synk): pltpu.roll(x, 1, axis=-1) + mask uses the idle XLU slot on hardware."""
    return jnp.concatenate([jnp.zeros_like(x[:, :1]), x[:, :-1]], axis=1)


def _lcs_wavefront(skew_ref, bsz, length, thres):
    """Score-weighted LCS DP over anti-diagonal wavefronts (2L-1 fori_loop steps)."""
    lane = lax.broadcasted_iota(jnp.int32, (bsz, length), 1)

    def body(r, carry):
        prev2, prev1 = carry                      # diagonals r-2, r-1
        s_r = skew_ref[r]                         # (B, L): sim on diagonal r
        new = jnp.where(s_r > thres,
                        _shift_right_lane(prev2) + s_r,            # C[i-1,j-1] + s
                        jnp.maximum(prev1, _shift_right_lane(prev1)))
        valid = (lane <= r) & (lane >= r - length + 1)
        return (prev1, jnp.where(valid, new, 0.0))

    init = (jnp.zeros((bsz, length), jnp.float32),
            jnp.zeros((bsz, length), jnp.float32))
    _, final = lax.fori_loop(0, 2 * length - 1, body, init)
    return final[:, length - 1:length]            # (B, 1) == C[L, L]


def _fsd_wavefront(m_ref, g_ref, bsz, length):
    """FSD DP (maxGamma == logsumexp, gamma=1), wavefront-vectorized, 2-exp logsumexp."""
    lane = lax.broadcasted_iota(jnp.int32, (bsz, length), 1)

    def body(r, carry):
        prev2, prev1 = carry
        m_r = m_ref[r]
        g_r = g_ref[r]
        n1 = _shift_right_lane(prev2)             # C[i-1, j-1]
        n2 = g_r + prev1                          # g + C[i-1, j]
        n3 = g_r + _shift_right_lane(prev1)       # g + C[i,   j-1]
        # logsumexp(n1, n2, n3) with only 2 exps (the max term contributes exactly 1)
        m23 = jnp.maximum(n2, n3)
        e1 = jnp.exp(-jnp.abs(n2 - n3))
        mx = jnp.maximum(n1, m23)
        ed = jnp.exp(-jnp.abs(n1 - m23))
        inner = 1.0 + ed + jnp.where(n1 >= m23, ed * e1, e1)
        new = m_r + mx + jnp.log(inner)
        valid = (lane <= r) & (lane >= r - length + 1)
        return (prev1, jnp.where(valid, new, 0.0))

    init = (jnp.zeros((bsz, length), jnp.float32),
            jnp.zeros((bsz, length), jnp.float32))
    _, final = lax.fori_loop(0, 2 * length - 1, body, init)
    return final[:, length - 1:length]            # (B, 1)


# --------------------------------------------------------------------------------------
# Kernel 2: fused cosine-sim + LCS / FSD DP + pos/neg aggregation (one launch)
# --------------------------------------------------------------------------------------
def _ftcl_pair_kernel(pair_ref, lcs0_ref, lcs1_ref, fa0_ref, fa1_ref, fb1_ref,
                      out_ref, lcs_skew_ref, m_skew_ref, g_skew_ref, *, thres):
    pair = pair_ref[...].astype(jnp.float32)                # (B, 1) in {0, 1}
    bsz = pair.shape[0]

    # ----- LCS similarities -----
    lcs_sim = _cos_bij(lcs0_ref[...], lcs1_ref[...])        # (B, L, L)
    lcs_len = lcs_sim.shape[1]

    # ----- FSD similarities, pos/neg branch folded by per-sample select of candi_1 -----
    fa0 = fa0_ref[...].astype(jnp.float32)
    c1 = jnp.where(pair[:, :, None] > 0.0,
                   fa1_ref[...].astype(jnp.float32),
                   fb1_ref[...].astype(jnp.float32))        # (B, L, D)
    half = fa0.shape[-1] // 2
    m_sim = _cos_bij(fa0[..., :half], c1[..., :half])
    g_sim = _cos_bij(fa0[..., half:], c1[..., half:])
    fsd_len = m_sim.shape[1]

    # ----- pre-skew anti-diagonals into VMEM scratch (one-time) -----
    _write_skew(lcs_sim, lcs_skew_ref)
    _write_skew(m_sim, m_skew_ref)
    _write_skew(g_sim, g_skew_ref)

    # ----- wavefront DPs -----
    lcs_val = _lcs_wavefront(lcs_skew_ref, bsz, lcs_len, thres)   # (B, 1)
    fsd_val = _fsd_wavefront(m_skew_ref, g_skew_ref, bsz, fsd_len)  # (B, 1)

    # ----- pos/neg aggregation -----
    pos_num = jnp.sum(pair)
    neg_num = bsz - pos_num
    inv_pos = 1.0 / (pos_num + 1e-10)
    inv_neg = 1.0 / (neg_num + 1e-10)
    out_ref[0] = (jnp.sum(lcs_val * (1.0 - pair)) * inv_neg
                  - jnp.sum(lcs_val * pair) * inv_pos)
    out_ref[1] = (jnp.sum(fsd_val * (1.0 - pair)) * inv_neg
                  - jnp.sum(fsd_val * pair) * inv_pos)


def ftcl_pair_losses(pair_label, lcs_c0, lcs_c1, fsd_a0, fsd_a1, fsd_b1, thres):
    bsz, lcs_len, _ = lcs_c0.shape
    fsd_len = fsd_a0.shape[1]
    scratch = [
        pltpu.VMEM((2 * lcs_len - 1, bsz, lcs_len), jnp.float32),
        pltpu.VMEM((2 * fsd_len - 1, bsz, fsd_len), jnp.float32),
        pltpu.VMEM((2 * fsd_len - 1, bsz, fsd_len), jnp.float32),
    ]
    # TODO(synk): on v7x split the batch across the two TensorCores (each sample's DP
    # is independent) and pack the DP state as (L, B) when B > L.
    out = pl.pallas_call(
        functools.partial(_ftcl_pair_kernel, thres=float(thres)),
        out_shape=jax.ShapeDtypeStruct((2,), jnp.float32),
        in_specs=[pl.BlockSpec(memory_space=pltpu.MemorySpace.VMEM)] * 6,
        out_specs=pl.BlockSpec(memory_space=pltpu.MemorySpace.SMEM),
        scratch_shapes=scratch,
        compiler_params=pltpu.CompilerParams(vmem_limit_bytes=32 * 1024 * 1024),
    )(pair_label.reshape(bsz, 1).astype(jnp.float32),
      lcs_c0, lcs_c1, fsd_a0, fsd_a1, fsd_b1)
    return out[0], out[1]


# --------------------------------------------------------------------------------------
# FTCLLoss (JAX / Pallas version)
# --------------------------------------------------------------------------------------
class FTCLLossPallas:
    def __init__(self, args, dataset='THUMOS14'):
        self.dataset = dataset
        self.lamb1 = args.loss_lamb_1
        self.lamb2 = args.loss_lamb_2
        self.lamb3 = args.loss_lamb_3
        self.action_cls_num = args.action_cls_num
        self.batch_size = args.batch_size
        self.feature_dim = args.feature_dim
        self.lamb_lcs = args.loss_lamb_lcs
        self.lamb_fsd = args.loss_lamb_fsd
        self.feat_margin = 50
        self.thres = args.thres
        self.lcs_len = args.lcs_len
        self.fsd_len = args.fsd_len

    @staticmethod
    def _stream_inputs(inst_cls, cont_cls, back_cls, vid_label, temp_att,
                       inst_feat, cont_feat, back_feat, inst_cas):
        # Lane-dense pre-reduction inputs: tiny XLA ops in the wrapper, (B, T) layout
        # so the dominant T reductions ride full 128-lane vregs inside the kernel.
        guide_in = (1.0 - inst_cas[:, :, -1].astype(jnp.float32)
                    - temp_att[:, :, 0].astype(jnp.float32))            # (B, T)
        sparse_in = (temp_att[:, :, 0].astype(jnp.float32)
                     + temp_att[:, :, 1].astype(jnp.float32))           # (B, T)
        return (inst_cls, cont_cls, back_cls, vid_label, guide_in, sparse_in,
                inst_feat, cont_feat, back_feat)

    def _combine_stream(self, row):
        act_inst, act_cont, act_back = row[0], row[1], row[2]
        guide, feat, sparse = row[3], row[4], row[5]
        if self.dataset == 'THUMOS14':
            cls_loss = 1.0 * act_inst + 1.0 * act_cont + 1.0 * act_back
        else:
            cls_loss = 5.0 * act_inst + 1.0 * act_cont + 1.0 * act_back
        loss = cls_loss + self.lamb1 * guide + self.lamb2 * feat + self.lamb3 * sparse
        loss_dict = {'act_inst_loss': act_inst, 'act_cont_loss': act_cont,
                     'act_back_loss': act_back, 'guide_loss': guide,
                     'feat_loss': feat, 'sparse_loss': sparse, 'acm_loss': loss}
        return loss, loss_dict

    def forward_once(self, act_inst_cls, act_cont_cls, act_back_cls, vid_label,
                     temp_att, act_inst_feat, act_cont_feat, act_back_feat,
                     act_inst_cas):
        raw = acm_losses([self._stream_inputs(
            act_inst_cls, act_cont_cls, act_back_cls, vid_label, temp_att,
            act_inst_feat, act_cont_feat, act_back_feat, act_inst_cas)])
        return self._combine_stream(raw[0])

    def __call__(self, act_inst_cls_0, act_cont_cls_0, act_back_cls_0, vid_label_0,
                 temp_att_0, act_inst_feat_0, act_cont_feat_0, act_back_feat_0,
                 act_inst_cas_0, lcs_candi_0, fsd_act_candi_0, fsd_bak_candi_0, args,
                 act_inst_cls_1=None, act_cont_cls_1=None, act_back_cls_1=None,
                 vid_label_1=None, temp_att_1=None, act_inst_feat_1=None,
                 act_cont_feat_1=None, act_back_feat_1=None, act_inst_cas_1=None,
                 lcs_candi_1=None, fsd_act_candi_1=None, fsd_bak_candi_1=None):
        if act_inst_cls_1 is None:
            return self.forward_once(act_inst_cls_0, act_cont_cls_0, act_back_cls_0,
                                     vid_label_0, temp_att_0, act_inst_feat_0,
                                     act_cont_feat_0, act_back_feat_0, act_inst_cas_0)

        # Both streams in ONE fused kernel launch.
        raw = acm_losses([
            self._stream_inputs(act_inst_cls_0, act_cont_cls_0, act_back_cls_0,
                                vid_label_0, temp_att_0, act_inst_feat_0,
                                act_cont_feat_0, act_back_feat_0, act_inst_cas_0),
            self._stream_inputs(act_inst_cls_1, act_cont_cls_1, act_back_cls_1,
                                vid_label_1, temp_att_1, act_inst_feat_1,
                                act_cont_feat_1, act_back_feat_1, act_inst_cas_1),
        ])
        loss_0, d0 = self._combine_stream(raw[0])
        loss_1, d1 = self._combine_stream(raw[1])
        acm_loss = (loss_0 + loss_1) / 2.0
        loss_dict = {k: (d0[k] + d1[k]) / 2.0 for k in d0}

        pair_label = (jnp.sum(vid_label_0 * vid_label_1, axis=1) > 0
                      ).astype(jnp.float32)

        lcs_raw = jnp.float32(0.0)
        fsd_raw = jnp.float32(0.0)
        if (not args.without_lcs) or (not args.without_fsd):
            lcs_raw, fsd_raw = ftcl_pair_losses(
                pair_label, lcs_candi_0, lcs_candi_1,
                fsd_act_candi_0, fsd_act_candi_1, fsd_bak_candi_1, self.thres)
        lcs_loss = jnp.float32(0.0) if args.without_lcs else lcs_raw
        fsd_loss = jnp.float32(0.0) if args.without_fsd else fsd_raw

        ftcl_loss = self.lamb_lcs * lcs_loss + self.lamb_fsd * fsd_loss
        loss = acm_loss + ftcl_loss
        loss_dict['lcs_loss'] = self.lamb_lcs * lcs_loss
        loss_dict['fsd_loss'] = self.lamb_fsd * fsd_loss
        return loss, loss_dict


# --------------------------------------------------------------------------------------
# Pure-numpy reference of the original PyTorch semantics (for verification)
# --------------------------------------------------------------------------------------
def _to_np(x):
    return np.asarray(jax.device_get(x), dtype=np.float64)


def _reference_total_loss(crit, args, t):
    t = {k: _to_np(v) for k, v in t.items()}

    def forward_once(ic, cc, bc, vid, att, fi, fc, fb, cas):
        bsz = ic.shape[0]
        il = np.hstack([vid, np.zeros((bsz, 1))])
        cl = np.hstack([vid, np.ones((bsz, 1))])
        bl = np.hstack([np.zeros_like(vid), np.ones((bsz, 1))])
        il = il / il.sum(1, keepdims=True)
        cl = cl / cl.sum(1, keepdims=True)
        bl = bl / bl.sum(1, keepdims=True)
        xe = lambda p, lab: -np.mean(np.sum(np.log(p + 1e-10) * lab, axis=1))
        inst, cont, back = xe(ic, il), xe(cc, cl), xe(bc, bl)
        guide = np.mean(np.sum(np.abs(1.0 - cas[:, :, -1] - att[:, :, 0]), axis=1))
        ni, nc, nb = (np.linalg.norm(f, axis=1) for f in (fi, fc, fb))
        f1 = np.maximum(50.0 - ni + nc, 0.0)
        f2 = np.maximum(50.0 - nc + nb, 0.0)
        feat = np.mean((f1 + f2 + nb) ** 2)
        sparse = np.mean(np.sum(att[:, :, :2], axis=1))
        w = 1.0 if crit.dataset == 'THUMOS14' else 5.0
        return (w * inst + cont + back
                + crit.lamb1 * guide + crit.lamb2 * feat + crit.lamb3 * sparse)

    def cos(a, b):
        an = a / np.sqrt((a * a).sum(-1, keepdims=True) + 1e-12)
        bn = b / np.sqrt((b * b).sum(-1, keepdims=True) + 1e-12)
        return an @ bn.T

    def lcs_dp(c0, c1):
        sim = cos(c0, c1)
        n = sim.shape[0]
        C = np.zeros((n + 1, n + 1))
        for i in range(1, n + 1):
            for j in range(1, n + 1):
                if sim[i - 1, j - 1] > crit.thres:
                    C[i, j] = C[i - 1, j - 1] + sim[i - 1, j - 1]
                else:
                    C[i, j] = max(C[i - 1, j], C[i, j - 1])
        return C[-1, -1]

    def max_gamma(x):
        m = x.max()
        return m + np.log(np.exp(x - m).sum())

    def fsd_dp(c0, c1):
        h = c1.shape[-1] // 2
        m = cos(c0[:, :h], c1[:, :h])
        g = cos(c0[:, h:], c1[:, h:])
        n = m.shape[0]
        C = np.zeros((n + 1, n + 1))
        for i in range(1, n + 1):
            for j in range(1, n + 1):
                nbr = np.array([C[i - 1, j - 1],
                                g[i - 1, j - 1] + C[i - 1, j],
                                g[i - 1, j - 1] + C[i, j - 1]])
                C[i, j] = m[i - 1, j - 1] + max_gamma(nbr)
        return C[-1, -1]

    loss0 = forward_once(t['ic0'], t['cc0'], t['bc0'], t['v0'], t['att0'],
                         t['fi0'], t['fc0'], t['fb0'], t['cas0'])
    loss1 = forward_once(t['ic1'], t['cc1'], t['bc1'], t['v1'], t['att1'],
                         t['fi1'], t['fc1'], t['fb1'], t['cas1'])
    pair = (np.sum(t['v0'] * t['v1'], axis=1) > 0).astype(np.float64)
    bsz = pair.shape[0]
    lcs = np.array([lcs_dp(t['lcs0'][b], t['lcs1'][b]) for b in range(bsz)])
    fsd = np.array([fsd_dp(t['fsda0'][b], t['fsda1'][b]) if pair[b] == 1
                    else fsd_dp(t['fsda0'][b], t['fsdb1'][b]) for b in range(bsz)])
    pos_num, neg_num = pair.sum(), bsz - pair.sum()
    lcs_loss = ((lcs * (1 - pair)).sum() / (neg_num + 1e-10)
                - (lcs * pair).sum() / (pos_num + 1e-10))
    fsd_loss = ((fsd * (1 - pair)).sum() / (neg_num + 1e-10)
                - (fsd * pair).sum() / (pos_num + 1e-10))
    if args.without_lcs:
        lcs_loss = 0.0
    if args.without_fsd:
        fsd_loss = 0.0
    total = ((loss0 + loss1) / 2.0
             + crit.lamb_lcs * lcs_loss + crit.lamb_fsd * fsd_loss)
    return total, crit.lamb_lcs * lcs_loss, crit.lamb_fsd * fsd_loss


# --------------------------------------------------------------------------------------
# demo
# --------------------------------------------------------------------------------------
class Args:
    loss_lamb_1 = 1.0
    loss_lamb_2 = 1e-4
    loss_lamb_3 = 1e-3
    loss_lamb_lcs = 0.1
    loss_lamb_fsd = 0.1
    action_cls_num = 4
    batch_size = 2
    feature_dim = 32
    thres = 0.5
    lcs_len = 8
    fsd_len = 8
    without_lcs = False
    without_fsd = False


if __name__ == "__main__":
    args = Args()
    B, C, T, D, L = 2, args.action_cls_num, 16, args.feature_dim, args.lcs_len

    key = jax.random.PRNGKey(0)
    keys = jax.random.split(key, 20)

    def probs(k, shape):
        return jax.nn.softmax(jax.random.normal(k, shape, jnp.float32), axis=-1)

    act_inst_cls_0 = probs(keys[0], (B, C + 1))
    act_cont_cls_0 = probs(keys[1], (B, C + 1))
    act_back_cls_0 = probs(keys[2], (B, C + 1))
    act_inst_cls_1 = probs(keys[3], (B, C + 1))
    act_cont_cls_1 = probs(keys[4], (B, C + 1))
    act_back_cls_1 = probs(keys[5], (B, C + 1))

    vid_label_0 = jnp.array([[1., 0., 1., 0.], [0., 1., 0., 0.]], jnp.float32)
    vid_label_1 = jnp.array([[1., 0., 0., 0.], [0., 0., 1., 1.]], jnp.float32)

    temp_att_0 = probs(keys[6], (B, T, 3))
    temp_att_1 = probs(keys[7], (B, T, 3))
    act_inst_cas_0 = probs(keys[8], (B, T, C + 1))
    act_inst_cas_1 = probs(keys[9], (B, T, C + 1))

    act_inst_feat_0 = 3.0 * jax.random.normal(keys[10], (B, D), jnp.float32)
    act_cont_feat_0 = 2.0 * jax.random.normal(keys[11], (B, D), jnp.float32)
    act_back_feat_0 = 1.0 * jax.random.normal(keys[12], (B, D), jnp.float32)
    act_inst_feat_1 = 3.0 * jax.random.normal(keys[13], (B, D), jnp.float32)
    act_cont_feat_1 = 2.0 * jax.random.normal(keys[14], (B, D), jnp.float32)
    act_back_feat_1 = 1.0 * jax.random.normal(keys[15], (B, D), jnp.float32)

    lcs_candi_0 = jax.random.normal(keys[16], (B, L, D), jnp.float32)
    lcs_candi_1 = jax.random.normal(keys[17], (B, L, D), jnp.float32)
    fsd_act_candi_0 = jax.random.normal(keys[18], (B, L, D), jnp.float32)
    fsd_act_candi_1 = jax.random.normal(keys[19], (B, L, D), jnp.float32)
    fsd_bak_candi_0 = fsd_act_candi_0 + 0.1
    fsd_bak_candi_1 = fsd_act_candi_1 - 0.1

    criterion = FTCLLossPallas(args, dataset='THUMOS14')
    loss, loss_dict = criterion(
        act_inst_cls_0, act_cont_cls_0, act_back_cls_0, vid_label_0, temp_att_0,
        act_inst_feat_0, act_cont_feat_0, act_back_feat_0, act_inst_cas_0,
        lcs_candi_0, fsd_act_candi_0, fsd_bak_candi_0, args,
        act_inst_cls_1, act_cont_cls_1, act_back_cls_1, vid_label_1, temp_att_1,
        act_inst_feat_1, act_cont_feat_1, act_back_feat_1, act_inst_cas_1,
        lcs_candi_1, fsd_act_candi_1, fsd_bak_candi_1)

    loss = jax.block_until_ready(loss)
    loss_dict = {k: float(v) for k, v in loss_dict.items()}

    # Verify against a pure-numpy reference of the original semantics.
    tensors = dict(
        ic0=act_inst_cls_0, cc0=act_cont_cls_0, bc0=act_back_cls_0, v0=vid_label_0,
        att0=temp_att_0, fi0=act_inst_feat_0, fc0=act_cont_feat_0, fb0=act_back_feat_0,
        cas0=act_inst_cas_0,
        ic1=act_inst_cls_1, cc1=act_cont_cls_1, bc1=act_back_cls_1, v1=vid_label_1,
        att1=temp_att_1, fi1=act_inst_feat_1, fc1=act_cont_feat_1, fb1=act_back_feat_1,
        cas1=act_inst_cas_1,
        lcs0=lcs_candi_0, lcs1=lcs_candi_1,
        fsda0=fsd_act_candi_0, fsda1=fsd_act_candi_1, fsdb1=fsd_bak_candi_1)
    ref_total, ref_lcs, ref_fsd = _reference_total_loss(criterion, args, tensors)

    assert jnp.isfinite(loss)
    assert abs(float(loss) - ref_total) <= 5e-3 + 5e-3 * abs(ref_total), \
        (float(loss), ref_total)
    assert abs(loss_dict['lcs_loss'] - ref_lcs) <= 5e-3 + 5e-3 * abs(ref_lcs)
    assert abs(loss_dict['fsd_loss'] - ref_fsd) <= 5e-3 + 5e-3 * abs(ref_fsd)
    print("KERNEL_OK")
</pallas_src>

<mosaic_0001>
module attributes {stable_mosaic.version = 11 : i64} {
  func.func @_acm_losses_kernel(%arg0: i32, %arg1: memref<2x5xf32, #tpu.memory_space<vmem>>, %arg2: memref<2x5xf32, #tpu.memory_space<vmem>>, %arg3: memref<2x5xf32, #tpu.memory_space<vmem>>, %arg4: memref<2x4xf32, #tpu.memory_space<vmem>>, %arg5: memref<2x16xf32, #tpu.memory_space<vmem>>, %arg6: memref<2x16xf32, #tpu.memory_space<vmem>>, %arg7: memref<2x32xf32, #tpu.memory_space<vmem>>, %arg8: memref<2x32xf32, #tpu.memory_space<vmem>>, %arg9: memref<2x32xf32, #tpu.memory_space<vmem>>, %arg10: memref<2x5xf32, #tpu.memory_space<vmem>>, %arg11: memref<2x5xf32, #tpu.memory_space<vmem>>, %arg12: memref<2x5xf32, #tpu.memory_space<vmem>>, %arg13: memref<2x4xf32, #tpu.memory_space<vmem>>, %arg14: memref<2x16xf32, #tpu.memory_space<vmem>>, %arg15: memref<2x16xf32, #tpu.memory_space<vmem>>, %arg16: memref<2x32xf32, #tpu.memory_space<vmem>>, %arg17: memref<2x32xf32, #tpu.memory_space<vmem>>, %arg18: memref<2x32xf32, #tpu.memory_space<vmem>>, %arg19: memref<2x6xf32, #tpu.memory_space<smem>>) attributes {dimension_semantics = [#tpu.dimension_semantics<arbitrary>], iteration_bounds = array<i64: 1>, scalar_prefetch = 0 : i64, scratch_operands = 0 : i64, tpu.core_type = #tpu.core_type<tc>, window_params = [{pipeline_mode = #tpu.pipeline_mode<synchronous>, transform_indices = @transform_0, window_bounds = array<i64: 2, 5>}, {pipeline_mode = #tpu.pipeline_mode<synchronous>, transform_indices = @transform_1, window_bounds = array<i64: 2, 5>}, {pipeline_mode = #tpu.pipeline_mode<synchronous>, transform_indices = @transform_2, window_bounds = array<i64: 2, 5>}, {pipeline_mode = #tpu.pipeline_mode<synchronous>, transform_indices = @transform_3, window_bounds = array<i64: 2, 4>}, {transform_indices = @transform_4, window_bounds = array<i64: 2, 16>}, {transform_indices = @transform_5, window_bounds = array<i64: 2, 16>}, {pipeline_mode = #tpu.pipeline_mode<synchronous>, transform_indices = @transform_6, window_bounds = array<i64: 2, 32>}, {pipeline_mode = #tpu.pipeline_mode<synchronous>, transform_indices = @transform_7, window_bounds = array<i64: 2, 32>}, {pipeline_mode = #tpu.pipeline_mode<synchronous>, transform_indices = @transform_8, window_bounds = array<i64: 2, 32>}, {pipeline_mode = #tpu.pipeline_mode<synchronous>, transform_indices = @transform_9, window_bounds = array<i64: 2, 5>}, {pipeline_mode = #tpu.pipeline_mode<synchronous>, transform_indices = @transform_10, window_bounds = array<i64: 2, 5>}, {pipeline_mode = #tpu.pipeline_mode<synchronous>, transform_indices = @transform_11, window_bounds = array<i64: 2, 5>}, {pipeline_mode = #tpu.pipeline_mode<synchronous>, transform_indices = @transform_12, window_bounds = array<i64: 2, 4>}, {transform_indices = @transform_13, window_bounds = array<i64: 2, 16>}, {transform_indices = @transform_14, window_bounds = array<i64: 2, 16>}, {pipeline_mode = #tpu.pipeline_mode<synchronous>, transform_indices = @transform_15, window_bounds = array<i64: 2, 32>}, {pipeline_mode = #tpu.pipeline_mode<synchronous>, transform_indices = @transform_16, window_bounds = array<i64: 2, 32>}, {pipeline_mode = #tpu.pipeline_mode<synchronous>, transform_indices = @transform_17, window_bounds = array<i64: 2, 32>}, {transform_indices = @transform_18, window_bounds = array<i64: 2, 6>}]} {
    %c0 = arith.constant 0 : index
    %c0_0 = arith.constant 0 : index
    %0 = vector.load %arg5[%c0, %c0_0] : memref<2x16xf32, #tpu.memory_space<vmem>>, vector<2x16xf32>
    %1 = math.absf %0 : vector<2x16xf32>
    %2 = vector.shape_cast %1 : vector<2x16xf32> to vector<1x2x16xf32>
    %cst = arith.constant dense<0.000000e+00> : vector<1xf32>
    %3 = vector.multi_reduction <add>, %2, %cst [1, 2] : vector<1x2x16xf32> to vector<1xf32>
    %4 = vector.shape_cast %3 : vector<1xf32> to vector<1x1x1xf32>
    %5 = vector.extract %4[0, 0, 0] : f32 from vector<1x1x1xf32>
    %cst_1 = arith.constant 5.000000e-01 : f32
    %6 = arith.mulf %5, %cst_1 : f32
    %c0_2 = arith.constant 0 : index
    %c0_3 = arith.constant 0 : index
    %7 = vector.load %arg6[%c0_2, %c0_3] : memref<2x16xf32, #tpu.memory_space<vmem>>, vector<2x16xf32>
    %8 = vector.shape_cast %7 : vector<2x16xf32> to vector<1x2x16xf32>
    %cst_4 = arith.constant dense<0.000000e+00> : vector<1xf32>
    %9 = vector.multi_reduction <add>, %8, %cst_4 [1, 2] : vector<1x2x16xf32> to vector<1xf32>
    %10 = vector.shape_cast %9 : vector<1xf32> to vector<1x1x1xf32>
    %11 = vector.extract %10[0, 0, 0] : f32 from vector<1x1x1xf32>
    %cst_5 = arith.constant 2.500000e-01 : f32
    %12 = arith.mulf %11, %cst_5 : f32
    %c0_i32 = arith.constant 0 : i32
    %13 = arith.cmpi eq, %arg0, %c0_i32 : i32
    %14 = arith.extui %13 : i1 to i32
    %c0_i32_6 = arith.constant 0 : i32
    %15 = arith.cmpi ne, %14, %c0_i32_6 : i32
    scf.if %15 {
      %c0_21 = arith.constant 0 : index
      %c0_22 = arith.constant 0 : index
      %38 = vector.load %arg1[%c0_21, %c0_22] : memref<2x5xf32, #tpu.memory_space<vmem>>, vector<2x5xf32>
      %c0_23 = arith.constant 0 : index
      %c0_24 = arith.constant 0 : index
      %39 = vector.load %arg2[%c0_23, %c0_24] : memref<2x5xf32, #tpu.memory_space<vmem>>, vector<2x5xf32>
      %c0_25 = arith.constant 0 : index
      %c0_26 = arith.constant 0 : index
      %40 = vector.load %arg3[%c0_25, %c0_26] : memref<2x5xf32, #tpu.memory_space<vmem>>, vector<2x5xf32>
      %c0_27 = arith.constant 0 : index
      %c0_28 = arith.constant 0 : index
      %41 = vector.load %arg4[%c0_27, %c0_28] : memref<2x4xf32, #tpu.memory_space<vmem>>, vector<2x4xf32>
      %cst_29 = arith.constant dense<0.000000e+00> : vector<2xf32>
      %42 = vector.multi_reduction <add>, %41, %cst_29 [1] : vector<2x4xf32> to vector<2xf32>
      %43 = vector.shape_cast %42 : vector<2xf32> to vector<2x1xf32>
      %cst_30 = arith.constant 1.000000e-10 : f32
      %44 = vector.broadcast %cst_30 : f32 to vector<2x5xf32>
      %45 = arith.addf %38, %44 : vector<2x5xf32>
      %46 = math.log %45 : vector<2x5xf32>
      %cst_31 = arith.constant 1.000000e-10 : f32
      %47 = vector.broadcast %cst_31 : f32 to vector<2x5xf32>
      %48 = arith.addf %39, %47 : vector<2x5xf32>
      %49 = math.log %48 : vector<2x5xf32>
      %50 = vector.extract_strided_slice %40 {offsets = [0, 4], sizes = [2, 1], strides = [1, 1]} : vector<2x5xf32> to vector<2x1xf32>
      %cst_32 = arith.constant 1.000000e-10 : f32
      %51 = vector.broadcast %cst_32 : f32 to vector<2x1xf32>
      %52 = arith.addf %50, %51 : vector<2x1xf32>
      %53 = math.log %52 : vector<2x1xf32>
      %54 = vector.extract_strided_slice %46 {offsets = [0, 0], sizes = [2, 4], strides = [1, 1]} : vector<2x5xf32> to vector<2x4xf32>
      %55 = arith.mulf %54, %41 : vector<2x4xf32>
      %cst_33 = arith.constant dense<0.000000e+00> : vector<2xf32>
      %56 = vector.multi_reduction <add>, %55, %cst_33 [1] : vector<2x4xf32> to vector<2xf32>
      %57 = vector.shape_cast %56 : vector<2xf32> to vector<2x1xf32>
      %58 = arith.divf %57, %43 : vector<2x1xf32>
      %59 = vector.shape_cast %58 : vector<2x1xf32> to vector<1x2x1xf32>
      %cst_34 = arith.constant dense<0.000000e+00> : vector<1xf32>
      %60 = vector.multi_reduction <add>, %59, %cst_34 [1, 2] : vector<1x2x1xf32> to vector<1xf32>
      %61 = vector.shape_cast %60 : vector<1xf32> to vector<1x1x1xf32>
      %62 = vector.extract %61[0, 0, 0] : f32 from vector<1x1x1xf32>
      %cst_35 = arith.constant 0.000000e+00 : f32
      %63 = arith.subf %cst_35, %62 : f32
      %cst_36 = arith.constant 5.000000e-01 : f32
      %64 = arith.mulf %63, %cst_36 : f32
      %65 = vector.extract_strided_slice %49 {offsets = [0, 0], sizes = [2, 4], strides = [1, 1]} : vector<2x5xf32> to vector<2x4xf32>
      %66 = arith.mulf %65, %41 : vector<2x4xf32>
      %cst_37 = arith.constant dense<0.000000e+00> : vector<2xf32>
      %67 = vector.multi_reduction <add>, %66, %cst_37 [1] : vector<2x4xf32> to vector<2xf32>
      %68 = vector.shape_cast %67 : vector<2xf32> to vector<2x1xf32>
      %69 = vector.extract_strided_slice %49 {offsets = [0, 4], sizes = [2, 1], strides = [1, 1]} : vector<2x5xf32> to vector<2x1xf32>
      %70 = arith.addf %68, %69 : vector<2x1xf32>
      %cst_38 = arith.constant 1.000000e+00 : f32
      %71 = vector.broadcast %cst_38 : f32 to vector<2x1xf32>
      %72 = arith.addf %43, %71 : vector<2x1xf32>
      %73 = arith.divf %70, %72 : vector<2x1xf32>
      %74 = vector.shape_cast %73 : vector<2x1xf32> to vector<1x2x1xf32>
      %cst_39 = arith.constant dense<0.000000e+00> : vector<1xf32>
      %75 = vector.multi_reduction <add>, %74, %cst_39 [1, 2] : vector<1x2x1xf32> to vector<1xf32>
      %76 = vector.shape_cast %75 : vector<1xf32> to vector<1x1x1xf32>
      %77 = vector.extract %76[0, 0, 0] : f32 from vector<1x1x1xf32>
      %cst_40 = arith.constant 0.000000e+00 : f32
      %78 = arith.subf %cst_40, %77 : f32
      %cst_41 = arith.constant 5.000000e-01 : f32
      %79 = arith.mulf %78, %cst_41 : f32
      %80 = vector.shape_cast %53 : vector<2x1xf32> to vector<1x2x1xf32>
      %cst_42 = arith.constant dense<0.000000e+00> : vector<1xf32>
      %81 = vector.multi_reduction <add>, %80, %cst_42 [1, 2] : vector<1x2x1xf32> to vector<1xf32>
      %82 = vector.shape_cast %81 : vector<1xf32> to vector<1x1x1xf32>
      %83 = vector.extract %82[0, 0, 0] : f32 from vector<1x1x1xf32>
      %cst_43 = arith.constant 0.000000e+00 : f32
      %84 = arith.subf %cst_43, %83 : f32
      %cst_44 = arith.constant 5.000000e-01 : f32
      %85 = arith.mulf %84, %cst_44 : f32
      %c0_45 = arith.constant 0 : index
      %c0_46 = arith.constant 0 : index
      %86 = vector.load %arg7[%c0_45, %c0_46] : memref<2x32xf32, #tpu.memory_space<vmem>>, vector<2x32xf32>
      %87 = arith.mulf %86, %86 : vector<2x32xf32>
      %cst_47 = arith.constant dense<0.000000e+00> : vector<2xf32>
      %88 = vector.multi_reduction <add>, %87, %cst_47 [1] : vector<2x32xf32> to vector<2xf32>
      %89 = vector.shape_cast %88 : vector<2xf32> to vector<2x1xf32>
      %90 = math.sqrt %89 : vector<2x1xf32>
      %c0_48 = arith.constant 0 : index
      %c0_49 = arith.constant 0 : index
      %91 = vector.load %arg8[%c0_48, %c0_49] : memref<2x32xf32, #tpu.memory_space<vmem>>, vector<2x32xf32>
      %92 = arith.mulf %91, %91 : vector<2x32xf32>
      %cst_50 = arith.constant dense<0.000000e+00> : vector<2xf32>
      %93 = vector.multi_reduction <add>, %92, %cst_50 [1] : vector<2x32xf32> to vector<2xf32>
      %94 = vector.shape_cast %93 : vector<2xf32> to vector<2x1xf32>
      %95 = math.sqrt %94 : vector<2x1xf32>
      %c0_51 = arith.constant 0 : index
      %c0_52 = arith.constant 0 : index
      %96 = vector.load %arg9[%c0_51, %c0_52] : memref<2x32xf32, #tpu.memory_space<vmem>>, vector<2x32xf32>
      %97 = arith.mulf %96, %96 : vector<2x32xf32>
      %cst_53 = arith.constant dense<0.000000e+00> : vector<2xf32>
      %98 = vector.multi_reduction <add>, %97, %cst_53 [1] : vector<2x32xf32> to vector<2xf32>
      %99 = vector.shape_cast %98 : vector<2xf32> to vector<2x1xf32>
      %100 = math.sqrt %99 : vector<2x1xf32>
      %cst_54 = arith.constant 5.000000e+01 : f32
      %101 = vector.broadcast %cst_54 : f32 to vector<2x1xf32>
      %102 = arith.subf %101, %90 : vector<2x1xf32>
      %103 = arith.addf %102, %95 : vector<2x1xf32>
      %cst_55 = arith.constant 0.000000e+00 : f32
      %104 = vector.broadcast %cst_55 : f32 to vector<2x1xf32>
      %105 = arith.maximumf %103, %104 : vector<2x1xf32>
      %cst_56 = arith.constant 5.000000e+01 : f32
      %106 = vector.broadcast %cst_56 : f32 to vector<2x1xf32>
      %107 = arith.subf %106, %95 : vector<2x1xf32>
      %108 = arith.addf %107, %100 : vector<2x1xf32>
      %cst_57 = arith.constant 0.000000e+00 : f32
      %109 = vector.broadcast %cst_57 : f32 to vector<2x1xf32>
      %110 = arith.maximumf %108, %109 : vector<2x1xf32>
      %111 = arith.addf %105, %110 : vector<2x1xf32>
      %112 = arith.addf %111, %100 : vector<2x1xf32>
      %113 = arith.mulf %112, %112 : vector<2x1xf32>
      %114 = vector.shape_cast %113 : vector<2x1xf32> to vector<1x2x1xf32>
      %cst_58 = arith.constant dense<0.000000e+00> : vector<1xf32>
      %115 = vector.multi_reduction <add>, %114, %cst_58 [1, 2] : vector<1x2x1xf32> to vector<1xf32>
      %116 = vector.shape_cast %115 : vector<1xf32> to vector<1x1x1xf32>
      %117 = vector.extract %116[0, 0, 0] : f32 from vector<1x1x1xf32>
      %cst_59 = arith.constant 5.000000e-01 : f32
      %118 = arith.mulf %117, %cst_59 : f32
      %c0_60 = arith.constant 0 : index
      %c0_61 = arith.constant 0 : index
      %119 = memref.load %arg19[%c0_60, %c0_61] : memref<2x6xf32, #tpu.memory_space<smem>>
      memref.store %64, %arg19[%c0_60, %c0_61] : memref<2x6xf32, #tpu.memory_space<smem>>
      %c0_62 = arith.constant 0 : index
      %c1 = arith.constant 1 : index
      %120 = memref.load %arg19[%c0_62, %c1] : memref<2x6xf32, #tpu.memory_space<smem>>
      memref.store %79, %arg19[%c0_62, %c1] : memref<2x6xf32, #tpu.memory_space<smem>>
      %c0_63 = arith.constant 0 : index
      %c2 = arith.constant 2 : index
      %121 = memref.load %arg19[%c0_63, %c2] : memref<2x6xf32, #tpu.memory_space<smem>>
      memref.store %85, %arg19[%c0_63, %c2] : memref<2x6xf32, #tpu.memory_space<smem>>
      %c0_64 = arith.constant 0 : index
      %c3 = arith.constant 3 : index
      %122 = memref.load %arg19[%c0_64, %c3] : memref<2x6xf32, #tpu.memory_space<smem>>
      memref.store %6, %arg19[%c0_64, %c3] : memref<2x6xf32, #tpu.memory_space<smem>>
      %c0_65 = arith.constant 0 : index
      %c4 = arith.constant 4 : index
      %123 = memref.load %arg19[%c0_65, %c4] : memref<2x6xf32, #tpu.memory_space<smem>>
      memref.store %118, %arg19[%c0_65, %c4] : memref<2x6xf32, #tpu.memory_space<smem>>
      %c0_66 = arith.constant 0 : index
      %c5 = arith.constant 5 : index
      %124 = memref.load %arg19[%c0_66, %c5] : memref<2x6xf32, #tpu.memory_space<smem>>
      memref.store %12, %arg19[%c0_66, %c5] : memref<2x6xf32, #tpu.memory_space<smem>>
    } else {
    }
    %c0_i32_7 = arith.constant 0 : i32
    %16 = arith.cmpi sgt, %arg0, %c0_i32_7 : i32
    %17 = arith.extui %16 : i1 to i32
    %c0_i32_8 = arith.constant 0 : i32
    %18 = arith.cmpi ne, %17, %c0_i32_8 : i32
    scf.if %18 {
      %c0_21 = arith.constant 0 : index
      %c3 = arith.constant 3 : index
      %38 = memref.load %arg19[%c0_21, %c3] : memref<2x6xf32, #tpu.memory_space<smem>>
      %39 = arith.addf %38, %6 : f32
      %c0_22 = arith.constant 0 : index
      %c3_23 = arith.constant 3 : index
      %40 = memref.load %arg19[%c0_22, %c3_23] : memref<2x6xf32, #tpu.memory_space<smem>>
      memref.store %39, %arg19[%c0_22, %c3_23] : memref<2x6xf32, #tpu.memory_space<smem>>
      %c0_24 = arith.constant 0 : index
      %c5 = arith.constant 5 : index
      %41 = memref.load %arg19[%c0_24, %c5] : memref<2x6xf32, #tpu.memory_space<smem>>
      %42 = arith.addf %41, %12 : f32
      %c0_25 = arith.constant 0 : index
      %c5_26 = arith.constant 5 : index
      %43 = memref.load %arg19[%c0_25, %c5_26] : memref<2x6xf32, #tpu.memory_space<smem>>
      memref.store %42, %arg19[%c0_25, %c5_26] : memref<2x6xf32, #tpu.memory_space<smem>>
    } else {
    }
    %c0_9 = arith.constant 0 : index
    %c0_10 = arith.constant 0 : index
    %19 = vector.load %arg14[%c0_9, %c0_10] : memref<2x16xf32, #tpu.memory_space<vmem>>, vector<2x16xf32>
    %20 = math.absf %19 : vector<2x16xf32>
    %21 = vector.shape_cast %20 : vector<2x16xf32> to vector<1x2x16xf32>
    %cst_11 = arith.constant dense<0.000000e+00> : vector<1xf32>
    %22 = vector.multi_reduction <add>, %21, %cst_11 [1, 2] : vector<1x2x16xf32> to vector<1xf32>
    %23 = vector.shape_cast %22 : vector<1xf32> to vector<1x1x1xf32>
    %24 = vector.extract %23[0, 0, 0] : f32 from vector<1x1x1xf32>
    %cst_12 = arith.constant 5.000000e-01 : f32
    %25 = arith.mulf %24, %cst_12 : f32
    %c0_13 = arith.constant 0 : index
    %c0_14 = arith.constant 0 : index
    %26 = vector.load %arg15[%c0_13, %c0_14] : memref<2x16xf32, #tpu.memory_space<vmem>>, vector<2x16xf32>
    %27 = vector.shape_cast %26 : vector<2x16xf32> to vector<1x2x16xf32>
    %cst_15 = arith.constant dense<0.000000e+00> : vector<1xf32>
    %28 = vector.multi_reduction <add>, %27, %cst_15 [1, 2] : vector<1x2x16xf32> to vector<1xf32>
    %29 = vector.shape_cast %28 : vector<1xf32> to vector<1x1x1xf32>
    %30 = vector.extract %29[0, 0, 0] : f32 from vector<1x1x1xf32>
    %cst_16 = arith.constant 2.500000e-01 : f32
    %31 = arith.mulf %30, %cst_16 : f32
    %c0_i32_17 = arith.constant 0 : i32
    %32 = arith.cmpi eq, %arg0, %c0_i32_17 : i32
    %33 = arith.extui %32 : i1 to i32
    %c0_i32_18 = arith.constant 0 : i32
    %34 = arith.cmpi ne, %33, %c0_i32_18 : i32
    scf.if %34 {
      %c0_21 = arith.constant 0 : index
      %c0_22 = arith.constant 0 : index
      %38 = vector.load %arg10[%c0_21, %c0_22] : memref<2x5xf32, #tpu.memory_space<vmem>>, vector<2x5xf32>
      %c0_23 = arith.constant 0 : index
      %c0_24 = arith.constant 0 : index
      %39 = vector.load %arg11[%c0_23, %c0_24] : memref<2x5xf32, #tpu.memory_space<vmem>>, vector<2x5xf32>
      %c0_25 = arith.constant 0 : index
      %c0_26 = arith.constant 0 : index
      %40 = vector.load %arg12[%c0_25, %c0_26] : memref<2x5xf32, #tpu.memory_space<vmem>>, vector<2x5xf32>
      %c0_27 = arith.constant 0 : index
      %c0_28 = arith.constant 0 : index
      %41 = vector.load %arg13[%c0_27, %c0_28] : memref<2x4xf32, #tpu.memory_space<vmem>>, vector<2x4xf32>
      %cst_29 = arith.constant dense<0.000000e+00> : vector<2xf32>
      %42 = vector.multi_reduction <add>, %41, %cst_29 [1] : vector<2x4xf32> to vector<2xf32>
      %43 = vector.shape_cast %42 : vector<2xf32> to vector<2x1xf32>
      %cst_30 = arith.constant 1.000000e-10 : f32
      %44 = vector.broadcast %cst_30 : f32 to vector<2x5xf32>
      %45 = arith.addf %38, %44 : vector<2x5xf32>
      %46 = math.log %45 : vector<2x5xf32>
      %cst_31 = arith.constant 1.000000e-10 : f32
      %47 = vector.broadcast %cst_31 : f32 to vector<2x5xf32>
      %48 = arith.addf %39, %47 : vector<2x5xf32>
      %49 = math.log %48 : vector<2x5xf32>
      %50 = vector.extract_strided_slice %40 {offsets = [0, 4], sizes = [2, 1], strides = [1, 1]} : vector<2x5xf32> to vector<2x1xf32>
      %cst_32 = arith.constant 1.000000e-10 : f32
      %51 = vector.broadcast %cst_32 : f32 to vector<2x1xf32>
      %52 = arith.addf %50, %51 : vector<2x1xf32>
      %53 = math.log %52 : vector<2x1xf32>
      %54 = vector.extract_strided_slice %46 {offsets = [0, 0], sizes = [2, 4], strides = [1, 1]} : vector<2x5xf32> to vector<2x4xf32>
      %55 = arith.mulf %54, %41 : vector<2x4xf32>
      %cst_33 = arith.constant dense<0.000000e+00> : vector<2xf32>
      %56 = vector.multi_reduction <add>, %55, %cst_33 [1] : vector<2x4xf32> to vector<2xf32>
      %57 = vector.shape_cast %56 : vector<2xf32> to vector<2x1xf32>
      %58 = arith.divf %57, %43 : vector<2x1xf32>
      %59 = vector.shape_cast %58 : vector<2x1xf32> to vector<1x2x1xf32>
      %cst_34 = arith.constant dense<0.000000e+00> : vector<1xf32>
      %60 = vector.multi_reduction <add>, %59, %cst_34 [1, 2] : vector<1x2x1xf32> to vector<1xf32>
      %61 = vector.shape_cast %60 : vector<1xf32> to vector<1x1x1xf32>
      %62 = vector.extract %61[0, 0, 0] : f32 from vector<1x1x1xf32>
      %cst_35 = arith.constant 0.000000e+00 : f32
      %63 = arith.subf %cst_35, %62 : f32
      %cst_36 = arith.constant 5.000000e-01 : f32
      %64 = arith.mulf %63, %cst_36 : f32
      %65 = vector.extract_strided_slice %49 {offsets = [0, 0], sizes = [2, 4], strides = [1, 1]} : vector<2x5xf32> to vector<2x4xf32>
      %66 = arith.mulf %65, %41 : vector<2x4xf32>
      %cst_37 = arith.constant dense<0.000000e+00> : vector<2xf32>
      %67 = vector.multi_reduction <add>, %66, %cst_37 [1] : vector<2x4xf32> to vector<2xf32>
      %68 = vector.shape_cast %67 : vector<2xf32> to vector<2x1xf32>
      %69 = vector.extract_strided_slice %49 {offsets = [0, 4], sizes = [2, 1], strides = [1, 1]} : vector<2x5xf32> to vector<2x1xf32>
      %70 = arith.addf %68, %69 : vector<2x1xf32>
      %cst_38 = arith.constant 1.000000e+00 : f32
      %71 = vector.broadcast %cst_38 : f32 to vector<2x1xf32>
      %72 = arith.addf %43, %71 : vector<2x1xf32>
      %73 = arith.divf %70, %72 : vector<2x1xf32>
      %74 = vector.shape_cast %73 : vector<2x1xf32> to vector<1x2x1xf32>
      %cst_39 = arith.constant dense<0.000000e+00> : vector<1xf32>
      %75 = vector.multi_reduction <add>, %74, %cst_39 [1, 2] : vector<1x2x1xf32> to vector<1xf32>
      %76 = vector.shape_cast %75 : vector<1xf32> to vector<1x1x1xf32>
      %77 = vector.extract %76[0, 0, 0] : f32 from vector<1x1x1xf32>
      %cst_40 = arith.constant 0.000000e+00 : f32
      %78 = arith.subf %cst_40, %77 : f32
      %cst_41 = arith.constant 5.000000e-01 : f32
      %79 = arith.mulf %78, %cst_41 : f32
      %80 = vector.shape_cast %53 : vector<2x1xf32> to vector<1x2x1xf32>
      %cst_42 = arith.constant dense<0.000000e+00> : vector<1xf32>
      %81 = vector.multi_reduction <add>, %80, %cst_42 [1, 2] : vector<1x2x1xf32> to vector<1xf32>
      %82 = vector.shape_cast %81 : vector<1xf32> to vector<1x1x1xf32>
      %83 = vector.extract %82[0, 0, 0] : f32 from vector<1x1x1xf32>
      %cst_43 = arith.constant 0.000000e+00 : f32
      %84 = arith.subf %cst_43, %83 : f32
      %cst_44 = arith.constant 5.000000e-01 : f32
      %85 = arith.mulf %84, %cst_44 : f32
      %c0_45 = arith.constant 0 : index
      %c0_46 = arith.constant 0 : index
      %86 = vector.load %arg16[%c0_45, %c0_46] : memref<2x32xf32, #tpu.memory_space<vmem>>, vector<2x32xf32>
      %87 = arith.mulf %86, %86 : vector<2x32xf32>
      %cst_47 = arith.constant dense<0.000000e+00> : vector<2xf32>
      %88 = vector.multi_reduction <add>, %87, %cst_47 [1] : vector<2x32xf32> to vector<2xf32>
      %89 = vector.shape_cast %88 : vector<2xf32> to vector<2x1xf32>
      %90 = math.sqrt %89 : vector<2x1xf32>
      %c0_48 = arith.constant 0 : index
      %c0_49 = arith.constant 0 : index
      %91 = vector.load %arg17[%c0_48, %c0_49] : memref<2x32xf32, #tpu.memory_space<vmem>>, vector<2x32xf32>
      %92 = arith.mulf %91, %91 : vector<2x32xf32>
      %cst_50 = arith.constant dense<0.000000e+00> : vector<2xf32>
      %93 = vector.multi_reduction <add>, %92, %cst_50 [1] : vector<2x32xf32> to vector<2xf32>
      %94 = vector.shape_cast %93 : vector<2xf32> to vector<2x1xf32>
      %95 = math.sqrt %94 : vector<2x1xf32>
      %c0_51 = arith.constant 0 : index
      %c0_52 = arith.constant 0 : index
      %96 = vector.load %arg18[%c0_51, %c0_52] : memref<2x32xf32, #tpu.memory_space<vmem>>, vector<2x32xf32>
      %97 = arith.mulf %96, %96 : vector<2x32xf32>
      %cst_53 = arith.constant dense<0.000000e+00> : vector<2xf32>
      %98 = vector.multi_reduction <add>, %97, %cst_53 [1] : vector<2x32xf32> to vector<2xf32>
      %99 = vector.shape_cast %98 : vector<2xf32> to vector<2x1xf32>
      %100 = math.sqrt %99 : vector<2x1xf32>
      %cst_54 = arith.constant 5.000000e+01 : f32
      %101 = vector.broadcast %cst_54 : f32 to vector<2x1xf32>
      %102 = arith.subf %101, %90 : vector<2x1xf32>
      %103 = arith.addf %102, %95 : vector<2x1xf32>
      %cst_55 = arith.constant 0.000000e+00 : f32
      %104 = vector.broadcast %cst_55 : f32 to vector<2x1xf32>
      %105 = arith.maximumf %103, %104 : vector<2x1xf32>
      %cst_56 = arith.constant 5.000000e+01 : f32
      %106 = vector.broadcast %cst_56 : f32 to vector<2x1xf32>
      %107 = arith.subf %106, %95 : vector<2x1xf32>
      %108 = arith.addf %107, %100 : vector<2x1xf32>
      %cst_57 = arith.constant 0.000000e+00 : f32
      %109 = vector.broadcast %cst_57 : f32 to vector<2x1xf32>
      %110 = arith.maximumf %108, %109 : vector<2x1xf32>
      %111 = arith.addf %105, %110 : vector<2x1xf32>
      %112 = arith.addf %111, %100 : vector<2x1xf32>
      %113 = arith.mulf %112, %112 : vector<2x1xf32>
      %114 = vector.shape_cast %113 : vector<2x1xf32> to vector<1x2x1xf32>
      %cst_58 = arith.constant dense<0.000000e+00> : vector<1xf32>
      %115 = vector.multi_reduction <add>, %114, %cst_58 [1, 2] : vector<1x2x1xf32> to vector<1xf32>
      %116 = vector.shape_cast %115 : vector<1xf32> to vector<1x1x1xf32>
      %117 = vector.extract %116[0, 0, 0] : f32 from vector<1x1x1xf32>
      %cst_59 = arith.constant 5.000000e-01 : f32
      %118 = arith.mulf %117, %cst_59 : f32
      %c1 = arith.constant 1 : index
      %c0_60 = arith.constant 0 : index
      %119 = memref.load %arg19[%c1, %c0_60] : memref<2x6xf32, #tpu.memory_space<smem>>
      memref.store %64, %arg19[%c1, %c0_60] : memref<2x6xf32, #tpu.memory_space<smem>>
      %c1_61 = arith.constant 1 : index
      %c1_62 = arith.constant 1 : index
      %120 = memref.load %arg19[%c1_61, %c1_62] : memref<2x6xf32, #tpu.memory_space<smem>>
      memref.store %79, %arg19[%c1_61, %c1_62] : memref<2x6xf32, #tpu.memory_space<smem>>
      %c1_63 = arith.constant 1 : index
      %c2 = arith.constant 2 : index
      %121 = memref.load %arg19[%c1_63, %c2] : memref<2x6xf32, #tpu.memory_space<smem>>
      memref.store %85, %arg19[%c1_63, %c2] : memref<2x6xf32, #tpu.memory_space<smem>>
      %c1_64 = arith.constant 1 : index
      %c3 = arith.constant 3 : index
      %122 = memref.load %arg19[%c1_64, %c3] : memref<2x6xf32, #tpu.memory_space<smem>>
      memref.store %25, %arg19[%c1_64, %c3] : memref<2x6xf32, #tpu.memory_space<smem>>
      %c1_65 = arith.constant 1 : index
      %c4 = arith.constant 4 : index
      %123 = memref.load %arg19[%c1_65, %c4] : memref<2x6xf32, #tpu.memory_space<smem>>
      memref.store %118, %arg19[%c1_65, %c4] : memref<2x6xf32, #tpu.memory_space<smem>>
      %c1_66 = arith.constant 1 : index
      %c5 = arith.constant 5 : index
      %124 = memref.load %arg19[%c1_66, %c5] : memref<2x6xf32, #tpu.memory_space<smem>>
      memref.store %31, %arg19[%c1_66, %c5] : memref<2x6xf32, #tpu.memory_space<smem>>
    } else {
    }
    %c0_i32_19 = arith.constant 0 : i32
    %35 = arith.cmpi sgt, %arg0, %c0_i32_19 : i32
    %36 = arith.extui %35 : i1 to i32
    %c0_i32_20 = arith.constant 0 : i32
    %37 = arith.cmpi ne, %36, %c0_i32_20 : i32
    scf.if %37 {
      %c1 = arith.constant 1 : index
      %c3 = arith.constant 3 : index
      %38 = memref.load %arg19[%c1, %c3] : memref<2x6xf32, #tpu.memory_space<smem>>
      %39 = arith.addf %38, %25 : f32
      %c1_21 = arith.constant 1 : index
      %c3_22 = arith.constant 3 : index
      %40 = memref.load %arg19[%c1_21, %c3_22] : memref<2x6xf32, #tpu.memory_space<smem>>
      memref.store %39, %arg19[%c1_21, %c3_22] : memref<2x6xf32, #tpu.memory_space<smem>>
      %c1_23 = arith.constant 1 : index
      %c5 = arith.constant 5 : index
      %41 = memref.load %arg19[%c1_23, %c5] : memref<2x6xf32, #tpu.memory_space<smem>>
      %42 = arith.addf %41, %31 : f32
      %c1_24 = arith.constant 1 : index
      %c5_25 = arith.constant 5 : index
      %43 = memref.load %arg19[%c1_24, %c5_25] : memref<2x6xf32, #tpu.memory_space<smem>>
      memref.store %42, %arg19[%c1_24, %c5_25] : memref<2x6xf32, #tpu.memory_space<smem>>
    } else {
    }
    return
  }
  func.func @transform_0(%arg0: i32) -> (i32, i32) {
    %c0_i32 = arith.constant 0 : i32
    %c0_i32_0 = arith.constant 0 : i32
    %c0_i32_1 = arith.constant 0 : i32
    return %c0_i32, %c0_i32_0 : i32, i32
  }
  func.func @transform_1(%arg0: i32) -> (i32, i32) {
    %c0_i32 = arith.constant 0 : i32
    %c0_i32_0 = arith.constant 0 : i32
    %c0_i32_1 = arith.constant 0 : i32
    return %c0_i32, %c0_i32_0 : i32, i32
  }
  func.func @transform_2(%arg0: i32) -> (i32, i32) {
    %c0_i32 = arith.constant 0 : i32
    %c0_i32_0 = arith.constant 0 : i32
    %c0_i32_1 = arith.constant 0 : i32
    return %c0_i32, %c0_i32_0 : i32, i32
  }
  func.func @transform_3(%arg0: i32) -> (i32, i32) {
    %c0_i32 = arith.constant 0 : i32
    %c0_i32_0 = arith.constant 0 : i32
    %c0_i32_1 = arith.constant 0 : i32
    return %c0_i32, %c0_i32_0 : i32, i32
  }
  func.func @transform_4(%arg0: i32) -> (i32, i32) {
    %c0_i32 = arith.constant 0 : i32
    %c0_i32_0 = arith.constant 0 : i32
    return %c0_i32, %arg0 : i32, i32
  }
  func.func @transform_5(%arg0: i32) -> (i32, i32) {
    %c0_i32 = arith.constant 0 : i32
    %c0_i32_0 = arith.constant 0 : i32
    return %c0_i32, %arg0 : i32, i32
  }
  func.func @transform_6(%arg0: i32) -> (i32, i32) {
    %c0_i32 = arith.constant 0 : i32
    %c0_i32_0 = arith.constant 0 : i32
    %c0_i32_1 = arith.constant 0 : i32
    return %c0_i32, %c0_i32_0 : i32, i32
  }
  func.func @transform_7(%arg0: i32) -> (i32, i32) {
    %c0_i32 = arith.constant 0 : i32
    %c0_i32_0 = arith.constant 0 : i32
    %c0_i32_1 = arith.constant 0 : i32
    return %c0_i32, %c0_i32_0 : i32, i32
  }
  func.func @transform_8(%arg0: i32) -> (i32, i32) {
    %c0_i32 = arith.constant 0 : i32
    %c0_i32_0 = arith.constant 0 : i32
    %c0_i32_1 = arith.constant 0 : i32
    return %c0_i32, %c0_i32_0 : i32, i32
  }
  func.func @transform_9(%arg0: i32) -> (i32, i32) {
    %c0_i32 = arith.constant 0 : i32
    %c0_i32_0 = arith.constant 0 : i32
    %c0_i32_1 = arith.constant 0 : i32
    return %c0_i32, %c0_i32_0 : i32, i32
  }
  func.func @transform_10(%arg0: i32) -> (i32, i32) {
    %c0_i32 = arith.constant 0 : i32
    %c0_i32_0 = arith.constant 0 : i32
    %c0_i32_1 = arith.constant 0 : i32
    return %c0_i32, %c0_i32_0 : i32, i32
  }
  func.func @transform_11(%arg0: i32) -> (i32, i32) {
    %c0_i32 = arith.constant 0 : i32
    %c0_i32_0 = arith.constant 0 : i32
    %c0_i32_1 = arith.constant 0 : i32
    return %c0_i32, %c0_i32_0 : i32, i32
  }
  func.func @transform_12(%arg0: i32) -> (i32, i32) {
    %c0_i32 = arith.constant 0 : i32
    %c0_i32_0 = arith.constant 0 : i32
    %c0_i32_1 = arith.constant 0 : i32
    return %c0_i32, %c0_i32_0 : i32, i32
  }
  func.func @transform_13(%arg0: i32) -> (i32, i32) {
    %c0_i32 = arith.constant 0 : i32
    %c0_i32_0 = arith.constant 0 : i32
    return %c0_i32, %arg0 : i32, i32
  }
  func.func @transform_14(%arg0: i32) -> (i32, i32) {
    %c0_i32 = arith.constant 0 : i32
    %c0_i32_0 = arith.constant 0 : i32
    return %c0_i32, %arg0 : i32, i32
  }
  func.func @transform_15(%arg0: i32) -> (i32, i32) {
    %c0_i32 = arith.constant 0 : i32
    %c0_i32_0 = arith.constant 0 : i32
    %c0_i32_1 = arith.constant 0 : i32
    return %c0_i32, %c0_i32_0 : i32, i32
  }
  func.func @transform_16(%arg0: i32) -> (i32, i32) {
    %c0_i32 = arith.constant 0 : i32
    %c0_i32_0 = arith.constant 0 : i32
    %c0_i32_1 = arith.constant 0 : i32
    return %c0_i32, %c0_i32_0 : i32, i32
  }
  func.func @transform_17(%arg0: i32) -> (i32, i32) {
    %c0_i32 = arith.constant 0 : i32
    %c0_i32_0 = arith.constant 0 : i32
    %c0_i32_1 = arith.constant 0 : i32
    return %c0_i32, %c0_i32_0 : i32, i32
  }
  func.func @transform_18(%arg0: i32) -> (i32, i32) {
    %c0_i32 = arith.constant 0 : i32
    %c0_i32_0 = arith.constant 0 : i32
    %c0_i32_1 = arith.constant 0 : i32
    return %c0_i32, %c0_i32_0 : i32, i32
  }
}

</mosaic_0001>

<llo_original>
// kernel: tpu_custom_call.1
$region0: #{tpu_custom_call.1}
  #allocation0 [shape = 'u32[]', space=smem, size = 0x4, offset = 0x4, fixed_abs, tag = 'smem constant byte address 0x4 - core index']
  #allocation1 [shape = 'u32[144,128]{1,0:T(1,128)}', space=vmem, size = 0x12000, scoped, tag = 'internal scratch']
  %s0 = inlined_call_operand.hbm [shape: f32[2,5], index: 0, kind: input, shape index: {}]
  %s1 = inlined_call_operand.vmem [shape: f32[2,5], index: 1, kind: input, shape index: {}]
  %s2 = inlined_call_operand.vmem [shape: f32[2,5], index: 2, kind: input, shape index: {}]
  %s3 = inlined_call_operand.vmem [shape: f32[2,4], index: 3, kind: input, shape index: {}]
  %s4 = inlined_call_operand.vmem [shape: f32[2,16], index: 4, kind: input, shape index: {}]
  %s5 = inlined_call_operand.vmem [shape: f32[2,16], index: 5, kind: input, shape index: {}]
  %s6 = inlined_call_operand.vmem [shape: f32[2,32], index: 6, kind: input, shape index: {}]
  %s7 = inlined_call_operand.vmem [shape: f32[2,32], index: 7, kind: input, shape index: {}]
  %s8 = inlined_call_operand.vmem [shape: f32[2,32], index: 8, kind: input, shape index: {}]
  %s9 = inlined_call_operand.vmem [shape: f32[2,5], index: 9, kind: input, shape index: {}]
  %s10 = inlined_call_operand.vmem [shape: f32[2,5], index: 10, kind: input, shape index: {}]
  %s11 = inlined_call_operand.vmem [shape: f32[2,5], index: 11, kind: input, shape index: {}]
  %s12 = inlined_call_operand.vmem [shape: f32[2,4], index: 12, kind: input, shape index: {}]
  %s13 = inlined_call_operand.vmem [shape: f32[2,16], index: 13, kind: input, shape index: {}]
  %s14 = inlined_call_operand.vmem [shape: f32[2,16], index: 14, kind: input, shape index: {}]
  %s15 = inlined_call_operand.vmem [shape: f32[2,32], index: 15, kind: input, shape index: {}]
  %s16 = inlined_call_operand.vmem [shape: f32[2,32], index: 16, kind: input, shape index: {}]
  %s17 = inlined_call_operand.vmem [shape: f32[2,32], index: 17, kind: input, shape index: {}]
  %s18 = inlined_call_operand.hbm [shape: f32[2,6], index: 18, kind: output, shape index: {}]
  %s19 = sld [smem:[#allocation0]]
  $region102: #{tpu_custom_call.1} parent=0
    _
  %s21 = ssub.s32 1, %s19
  %s22 = scalar_select 0, %s21, %s19
  $region1: #{tpu_custom_call.1} parent=0
    #allocation2 [shape = 'u8[1024]{0}', space=vmem, size = 0x400, scoped, tag = 'input window, operand 0, single buffered']
    #allocation3 [shape = 's32[1]{0}', space=sflag, size = 0x4, scoped, tag = 'scoped memory for tpu_custom_call.1']
    #allocation4 [shape = 's32[1]{0}', space=sflag, size = 0x4, scoped, tag = 'scoped memory for tpu_custom_call.1']
    #allocation5 [shape = 'u8[1024]{0}', space=smem, size = 0x400, scoped, tag = 'output window, operand 0, single buffered']
    %23 = vsyncpa [#allocation3], 0
    %24 = vsyncpa [#allocation4], 0
    // Predicated region
    $region2: #{tpu_custom_call.1} parent=1 // pred_check
      _
    $region3: #{tpu_custom_call.1} parent=1 // pred_check_branch
      %26 = sbr.rel (0) target = $region5
    $region4: #{tpu_custom_call.1} parent=1 // pred_region
      %s28 = ssub.s32 32, 32
      %29 = vsyncadd [#allocation3], %s28
      %s31 = sshll.u32 [#allocation2], 4
      %s32 = int_to_ptr.vmem [resolvable:$true] %s31
      %34 = dma.hbm_to_vmem [thread:$0]  %s0, 32, %s32, [#allocation3]
    $region5: #{tpu_custom_call.1} parent=1 // pred_fallthru
      _
    // Predicated region
    $region6: #{tpu_custom_call.1} parent=1 // pred_check
      _
    $region7: #{tpu_custom_call.1} parent=1 // pred_check_branch
      %36 = sbr.rel (0) target = $region9
    $region8: #{tpu_custom_call.1} parent=1 // pred_region
      _
    $region9: #{tpu_custom_call.1} parent=1 // pred_fallthru
      _
    // Predicated region
    $region10: #{tpu_custom_call.1} parent=1 // pred_check
      _
    $region11: #{tpu_custom_call.1} parent=1 // pred_check_branch
      %38 = sbr.rel (0) target = $region13
    $region12: #{tpu_custom_call.1} parent=1 // pred_region
      _
    $region13: #{tpu_custom_call.1} parent=1 // pred_fallthru
      _
    // Predicated region
    $region14: #{tpu_custom_call.1} parent=1 // pred_check
      _
    $region15: #{tpu_custom_call.1} parent=1 // pred_check_branch
      %40 = sbr.rel (0) target = $region17
    $region16: #{tpu_custom_call.1} parent=1 // pred_region
      _
    $region17: #{tpu_custom_call.1} parent=1 // pred_fallthru
      _
    // Predicated region
    $region18: #{tpu_custom_call.1} parent=1 // pred_check
      _
    $region19: #{tpu_custom_call.1} parent=1 // pred_check_branch
      %42 = sbr.rel (0) target = $region21
    $region20: #{tpu_custom_call.1} parent=1 // pred_region
      _
    $region21: #{tpu_custom_call.1} parent=1 // pred_fallthru
      _
    // Predicated region
    $region22: #{tpu_custom_call.1} parent=1 // pred_check
      _
    $region23: #{tpu_custom_call.1} parent=1 // pred_check_branch
      %44 = sbr.rel (0) target = $region25
    $region24: #{tpu_custom_call.1} parent=1 // pred_region
      _
    $region25: #{tpu_custom_call.1} parent=1 // pred_fallthru
      _
    // Predicated region
    $region26: #{tpu_custom_call.1} parent=1 // pred_check
      _
    $region27: #{tpu_custom_call.1} parent=1 // pred_check_branch
      %46 = sbr.rel (0) target = $region29
    $region28: #{tpu_custom_call.1} parent=1 // pred_region
      _
    $region29: #{tpu_custom_call.1} parent=1 // pred_fallthru
      _
    // Predicated region
    $region30: #{tpu_custom_call.1} parent=1 // pred_check
      _
    $region31: #{tpu_custom_call.1} parent=1 // pred_check_branch
      %48 = sbr.rel (0) target = $region33
    $region32: #{tpu_custom_call.1} parent=1 // pred_region
      _
    $region33: #{tpu_custom_call.1} parent=1 // pred_fallthru
      _
    // Predicated region
    $region34: #{tpu_custom_call.1} parent=1 // pred_check
      _
    $region35: #{tpu_custom_call.1} parent=1 // pred_check_branch
      %50 = sbr.rel (0) target = $region37
    $region36: #{tpu_custom_call.1} parent=1 // pred_region
      _
    $region37: #{tpu_custom_call.1} parent=1 // pred_fallthru
      _
    // Predicated region
    $region38: #{tpu_custom_call.1} parent=1 // pred_check
      _
    $region39: #{tpu_custom_call.1} parent=1 // pred_check_branch
      %52 = sbr.rel (0) target = $region41
    $region40: #{tpu_custom_call.1} parent=1 // pred_region
      _
    $region41: #{tpu_custom_call.1} parent=1 // pred_fallthru
      _
    // Predicated region
    $region42: #{tpu_custom_call.1} parent=1 // pred_check
      _
    $region43: #{tpu_custom_call.1} parent=1 // pred_check_branch
      %54 = sbr.rel (0) target = $region45
    $region44: #{tpu_custom_call.1} parent=1 // pred_region
      _
    $region45: #{tpu_custom_call.1} parent=1 // pred_fallthru
      _
    // Predicated region
    $region46: #{tpu_custom_call.1} parent=1 // pred_check
      _
    $region47: #{tpu_custom_call.1} parent=1 // pred_check_branch
      %56 = sbr.rel (0) target = $region49
    $region48: #{tpu_custom_call.1} parent=1 // pred_region
      _
    $region49: #{tpu_custom_call.1} parent=1 // pred_fallthru
      _
    // Predicated region
    $region50: #{tpu_custom_call.1} parent=1 // pred_check
      _
    $region51: #{tpu_custom_call.1} parent=1 // pred_check_branch
      %58 = sbr.rel (0) target = $region53
    $region52: #{tpu_custom_call.1} parent=1 // pred_region
      _
    $region53: #{tpu_custom_call.1} parent=1 // pred_fallthru
      _
    // Predicated region
    $region54: #{tpu_custom_call.1} parent=1 // pred_check
      _
    $region55: #{tpu_custom_call.1} parent=1 // pred_check_branch
      %60 = sbr.rel (0) target = $region57
    $region56: #{tpu_custom_call.1} parent=1 // pred_region
      _
    $region57: #{tpu_custom_call.1} parent=1 // pred_fallthru
      _
    // Predicated region
    $region58: #{tpu_custom_call.1} parent=1 // pred_check
      _
    $region59: #{tpu_custom_call.1} parent=1 // pred_check_branch
      %62 = sbr.rel (0) target = $region61
    $region60: #{tpu_custom_call.1} parent=1 // pred_region
      _
    $region61: #{tpu_custom_call.1} parent=1 // pred_fallthru
      _
    // Predicated region
    $region62: #{tpu_custom_call.1} parent=1 // pred_check
      _
    $region63: #{tpu_custom_call.1} parent=1 // pred_check_branch
      %64 = sbr.rel (0) target = $region65
    $region64: #{tpu_custom_call.1} parent=1 // pred_region
      _
    $region65: #{tpu_custom_call.1} parent=1 // pred_fallthru
      _
    // Predicated region
    $region66: #{tpu_custom_call.1} parent=1 // pred_check
      _
    $region67: #{tpu_custom_call.1} parent=1 // pred_check_branch
      %66 = sbr.rel (0) target = $region69
    $region68: #{tpu_custom_call.1} parent=1 // pred_region
      _
    $region69: #{tpu_custom_call.1} parent=1 // pred_fallthru
      _
    // Predicated region
    $region70: #{tpu_custom_call.1} parent=1 // pred_check
      _
    $region71: #{tpu_custom_call.1} parent=1 // pred_check_branch
      %68 = sbr.rel (0) target = $region73
    $region72: #{tpu_custom_call.1} parent=1 // pred_region
      _
    $region73: #{tpu_custom_call.1} parent=1 // pred_fallthru
      _
    // Predicated region
    $region74: #{tpu_custom_call.1} parent=1 // pred_check
      _
    $region75: #{tpu_custom_call.1} parent=1 // pred_check_branch
      %70 = sbr.rel (0) target = $region77
    $region76: #{tpu_custom_call.1} parent=1 // pred_region
      %71 = dma.done [#allocation3], 32
    $region77: #{tpu_custom_call.1} parent=1 // pred_fallthru
      _
    %v72 = vld [vmem:[%s4] sm:$0x3]
    %v73 = vand.u32 2147483647, %v72
    %vm74 = vcmask 123904
    %v75 = vsel %vm74, %v73, 0.0
    %76 = vadd.xlane.f32.xlu0 %v75
    %v77 = vpop.xlane.xlu0 %76
    %v78 = vrot.slane %v77, 4
    %v79 = vadd.f32 %v77, %v78
    %v80 = vrot.slane %v79, 2
    %v81 = vadd.f32 %v79, %v80
    %v82 = vrot.slane %v81, 1
    %v83 = vadd.f32 %v81, %v82
    %s84 = vtos %v83
    %s85 = smul.f32 %s84, 0.5
    %v86 = vld [vmem:[%s5] sm:$0x3]
    %v87 = vsel %vm74, %v86, 0.0
    %88 = vadd.xlane.f32.xlu0 %v87
    %v89 = vpop.xlane.xlu0 %88
    %v90 = vrot.slane %v89, 4
    %v91 = vadd.f32 %v89, %v90
    %v92 = vrot.slane %v91, 2
    %v93 = vadd.f32 %v91, %v92
    %v94 = vrot.slane %v93, 1
    %v95 = vadd.f32 %v93, %v94
    %s96 = vtos %v95
    %s97 = smul.f32 %s96, 0.25
    %p98 = scmp.eq.s32.totalorder 0, 0
    // Predicated region
    $region78: #{tpu_custom_call.1} parent=1 // pred_check
      %p99 = pneg %p98
    $region79: #{tpu_custom_call.1} parent=1 // pred_check_branch
      %101 = sbr.rel (%p99) target = $region81
    $region80: #{tpu_custom_call.1} parent=1 // pred_region
      %v102 = vld [vmem:[#allocation2] sm:$0x3]
      %v103 = vld [vmem:[%s1] sm:$0x3]
      %v104 = vld [vmem:[%s2] sm:$0x3]
      %v105 = vld [vmem:[%s3] sm:$0x3]
      %vm106 = vcmask 25600
      %v107 = vsel %vm106, %v105, 0.0
      %108 = vadd.xlane.f32.xlu0 %v107
      %v109 = vpop.xlane.xlu0 %108
      %v110 = vadd.f32 %v102, 1e-10
      %v111 = vlog2.pop %v110
      %v112 = vmul.f32 %v111, 0.6931472
      %v113 = vadd.f32 %v103, 1e-10
      %v114 = vlog2.pop %v113
      %v115 = vmul.f32 %v114, 0.6931472
      %v116 = vadd.f32 %v104, 1e-10
      %v117 = vlog2.pop %v116
      %v118 = vmul.f32 %v117, 0.6931472
      %v119 = vmul.f32 %v112, %v105
      %v120 = vsel %vm106, %v119, 0.0
      %121 = vadd.xlane.f32.xlu0 %v120
      %v122 = vpop.xlane.xlu0 %121
      %v123 = vrcp.pop %v109
      %v124 = vmul.f32 %v122, %v123
      %vm125 = vcmask 1024
      %v126 = vsel %vm125, %v124, 0.0
      %127 = vadd.xlane.f32.xlu0 %v126
      %v128 = vpop.xlane.xlu0 %127
      %v129 = vrot.slane %v128, 4
      %v130 = vadd.f32 %v128, %v129
      %v131 = vrot.slane %v130, 2
      %v132 = vadd.f32 %v130, %v131
      %v133 = vrot.slane %v132, 1
      %v134 = vadd.f32 %v132, %v133
      %s135 = vtos %v134
      %s136 = ssub.f32 0.0, %s135
      %s137 = smul.f32 %s136, 0.5
      %v138 = vmul.f32 %v115, %v105
      %v139 = vsel %vm106, %v138, 0.0
      %140 = vadd.xlane.f32.xlu0 %v139
      %v141 = vpop.xlane.xlu0 %140
      %v142 = vadd.f32 %v141, %v115
      %v143 = vadd.f32 %v109, 1.0
      %v144 = vrcp.pop %v143
      %v145 = vmul.f32 %v142, %v144
      %147 = vrot.lane.b32.xlu0 %v145, 124
      %v148 = vpop.permute.xlu0 %147
      %v150 = vsel %vm125, %v148, 0.0
      %151 = vadd.xlane.f32.xlu0 %v150
      %v152 = vpop.xlane.xlu0 %151
      %v153 = vrot.slane %v152, 4
      %v154 = vadd.f32 %v152, %v153
      %v155 = vrot.slane %v154, 2
      %v156 = vadd.f32 %v154, %v155
      %v157 = vrot.slane %v156, 1
      %v158 = vadd.f32 %v156, %v157
      %s159 = vtos %v158
      %s160 = ssub.f32 0.0, %s159
      %s161 = smul.f32 %s160, 0.5
      %163 = vrot.lane.b32.xlu0 %v118, 124
      %v164 = vpop.permute.xlu0 %163
      %v166 = vsel %vm125, %v164, 0.0
      %167 = vadd.xlane.f32.xlu0 %v166
      %v168 = vpop.xlane.xlu0 %167
      %v169 = vrot.slane %v168, 4
      %v170 = vadd.f32 %v168, %v169
      %v171 = vrot.slane %v170, 2
      %v172 = vadd.f32 %v170, %v171
      %v173 = vrot.slane %v172, 1
      %v174 = vadd.f32 %v172, %v173
      %s175 = vtos %v174
      %s176 = ssub.f32 0.0, %s175
      %s177 = smul.f32 %s176, 0.5
      %v178 = vld [vmem:[%s6] sm:$0x3]
      %v179 = vmul.f32 %v178, %v178
      %vm180 = vcmask 254976
      %v181 = vsel %vm180, %v179, 0.0
      %182 = vadd.xlane.f32.xlu0 %v181
      %v183 = vpop.xlane.xlu0 %182
      %v184 = vrsqrt.pop %v183
      %v185 = vmul.f32 %v183, %v184
      %vm186 = vcmp.eq.f32.partialorder %v183, inf
      %v187 = vsel %vm186, %v183, %v185
      %vm188 = vcmp.eq.f32.partialorder %v183, 0.0
      %v189 = vand.u32 %v183, 2147483648
      %v190 = vsel %vm188, %v189, %v187
      %v191 = vld [vmem:[%s7] sm:$0x3]
      %v192 = vmul.f32 %v191, %v191
      %v193 = vsel %vm180, %v192, 0.0
      %194 = vadd.xlane.f32.xlu0 %v193
      %v195 = vpop.xlane.xlu0 %194
      %v196 = vrsqrt.pop %v195
      %v197 = vmul.f32 %v195, %v196
      %vm198 = vcmp.eq.f32.partialorder %v195, inf
      %v199 = vsel %vm198, %v195, %v197
      %vm200 = vcmp.eq.f32.partialorder %v195, 0.0
      %v201 = vand.u32 %v195, 2147483648
      %v202 = vsel %vm200, %v201, %v199
      %v203 = vld [vmem:[%s8] sm:$0x3]
      %v204 = vmul.f32 %v203, %v203
      %v205 = vsel %vm180, %v204, 0.0
      %206 = vadd.xlane.f32.xlu0 %v205
      %v207 = vpop.xlane.xlu0 %206
      %v208 = vrsqrt.pop %v207
      %v209 = vmul.f32 %v207, %v208
      %vm210 = vcmp.eq.f32.partialorder %v207, inf
      %v211 = vsel %vm210, %v207, %v209
      %vm212 = vcmp.eq.f32.partialorder %v207, 0.0
      %v213 = vand.u32 %v207, 2147483648
      %v214 = vsel %vm212, %v213, %v211
      %v215 = vsub.f32 50.0, %v190
      %v216 = vadd.f32 %v215, %v202
      %v217 = vmax.f32 %v216, 0.0
      %v218 = vsub.f32 50.0, %v202
      %v219 = vadd.f32 %v218, %v214
      %v220 = vmax.f32 %v219, 0.0
      %v221 = vadd.f32 %v217, %v220
      %v222 = vadd.f32 %v221, %v214
      %v223 = vmul.f32 %v222, %v222
      %v224 = vsel %vm125, %v223, 0.0
      %225 = vadd.xlane.f32.xlu0 %v224
      %v226 = vpop.xlane.xlu0 %225
      %v227 = vrot.slane %v226, 4
      %v228 = vadd.f32 %v226, %v227
      %v229 = vrot.slane %v228, 2
      %v230 = vadd.f32 %v228, %v229
      %v231 = vrot.slane %v230, 1
      %v232 = vadd.f32 %v230, %v231
      %s233 = vtos %v232
      %s234 = smul.f32 %s233, 0.5
      %s235 = scalar_lea.smem [#allocation5], 0
      %236 = sst [smem:[%s235]] %s137
      %s237 = scalar_lea.smem [#allocation5], 1
      %238 = sst [smem:[%s237]] %s161
      %s239 = scalar_lea.smem [#allocation5], 2
      %240 = sst [smem:[%s239]] %s177
      %s241 = scalar_lea.smem [#allocation5], 3
      %242 = sst [smem:[%s241]] %s85
      %s243 = scalar_lea.smem [#allocation5], 4
      %244 = sst [smem:[%s243]] %s234
      %s245 = scalar_lea.smem [#allocation5], 5
      %246 = sst [smem:[%s245]] %s97
    $region81: #{tpu_custom_call.1} parent=1 // pred_fallthru
      _
    %p247 = scmp.gt.s32.totalorder 0, 0
    // Predicated region
    $region82: #{tpu_custom_call.1} parent=1 // pred_check
      %p248 = pneg %p247
    $region83: #{tpu_custom_call.1} parent=1 // pred_check_branch
      %250 = sbr.rel (%p248) target = $region85
    $region84: #{tpu_custom_call.1} parent=1 // pred_region
      %s251 = sld [smem:[#allocation5 + $0x3]]
      %s252 = sadd.f32 %s251, %s85
      %s253 = scalar_lea.smem [#allocation5], 3
      %254 = sst [smem:[%s253]] %s252
      %s255 = sld [smem:[#allocation5 + $0x5]]
      %s256 = sadd.f32 %s255, %s97
      %s257 = scalar_lea.smem [#allocation5], 5
      %258 = sst [smem:[%s257]] %s256
    $region85: #{tpu_custom_call.1} parent=1 // pred_fallthru
      _
    %v259 = vld [vmem:[%s13] sm:$0x3]
    %v260 = vand.u32 2147483647, %v259
    %v261 = vsel %vm74, %v260, 0.0
    %262 = vadd.xlane.f32.xlu0 %v261
    %v263 = vpop.xlane.xlu0 %262
    %v264 = vrot.slane %v263, 4
    %v265 = vadd.f32 %v263, %v264
    %v266 = vrot.slane %v265, 2
    %v267 = vadd.f32 %v265, %v266
    %v268 = vrot.slane %v267, 1
    %v269 = vadd.f32 %v267, %v268
    %s270 = vtos %v269
    %s271 = smul.f32 %s270, 0.5
    %v272 = vld [vmem:[%s14] sm:$0x3]
    %v273 = vsel %vm74, %v272, 0.0
    %274 = vadd.xlane.f32.xlu0 %v273
    %v275 = vpop.xlane.xlu0 %274
    %v276 = vrot.slane %v275, 4
    %v277 = vadd.f32 %v275, %v276
    %v278 = vrot.slane %v277, 2
    %v279 = vadd.f32 %v277, %v278
    %v280 = vrot.slane %v279, 1
    %v281 = vadd.f32 %v279, %v280
    %s282 = vtos %v281
    %s283 = smul.f32 %s282, 0.25
    // Predicated region
    $region86: #{tpu_custom_call.1} parent=1 // pred_check
      %p284 = pneg %p98
    $region87: #{tpu_custom_call.1} parent=1 // pred_check_branch
      %286 = sbr.rel (%p284) target = $region89
    $region88: #{tpu_custom_call.1} parent=1 // pred_region
      %v287 = vld [vmem:[%s9] sm:$0x3]
      %v288 = vld [vmem:[%s10] sm:$0x3]
      %v289 = vld [vmem:[%s11] sm:$0x3]
      %v290 = vld [vmem:[%s12] sm:$0x3]
      %vm291 = vcmask 25600
      %v292 = vsel %vm291, %v290, 0.0
      %293 = vadd.xlane.f32.xlu0 %v292
      %v294 = vpop.xlane.xlu0 %293
      %v295 = vadd.f32 %v287, 1e-10
      %v296 = vlog2.pop %v295
      %v297 = vmul.f32 %v296, 0.6931472
      %v298 = vadd.f32 %v288, 1e-10
      %v299 = vlog2.pop %v298
      %v300 = vmul.f32 %v299, 0.6931472
      %v301 = vadd.f32 %v289, 1e-10
      %v302 = vlog2.pop %v301
      %v303 = vmul.f32 %v302, 0.6931472
      %v304 = vmul.f32 %v297, %v290
      %v305 = vsel %vm291, %v304, 0.0
      %306 = vadd.xlane.f32.xlu0 %v305
      %v307 = vpop.xlane.xlu0 %306
      %v308 = vrcp.pop %v294
      %v309 = vmul.f32 %v307, %v308
      %vm310 = vcmask 1024
      %v311 = vsel %vm310, %v309, 0.0
      %312 = vadd.xlane.f32.xlu0 %v311
      %v313 = vpop.xlane.xlu0 %312
      %v314 = vrot.slane %v313, 4
      %v315 = vadd.f32 %v313, %v314
      %v316 = vrot.slane %v315, 2
      %v317 = vadd.f32 %v315, %v316
      %v318 = vrot.slane %v317, 1
      %v319 = vadd.f32 %v317, %v318
      %s320 = vtos %v319
      %s321 = ssub.f32 0.0, %s320
      %s322 = smul.f32 %s321, 0.5
      %v323 = vmul.f32 %v300, %v290
      %v324 = vsel %vm291, %v323, 0.0
      %325 = vadd.xlane.f32.xlu0 %v324
      %v326 = vpop.xlane.xlu0 %325
      %v327 = vadd.f32 %v326, %v300
      %v328 = vadd.f32 %v294, 1.0
      %v329 = vrcp.pop %v328
      %v330 = vmul.f32 %v327, %v329
      %332 = vrot.lane.b32.xlu0 %v330, 124
      %v333 = vpop.permute.xlu0 %332
      %v335 = vsel %vm310, %v333, 0.0
      %336 = vadd.xlane.f32.xlu0 %v335
      %v337 = vpop.xlane.xlu0 %336
      %v338 = vrot.slane %v337, 4
      %v339 = vadd.f32 %v337, %v338
      %v340 = vrot.slane %v339, 2
      %v341 = vadd.f32 %v339, %v340
      %v342 = vrot.slane %v341, 1
      %v343 = vadd.f32 %v341, %v342
      %s344 = vtos %v343
      %s345 = ssub.f32 0.0, %s344
      %s346 = smul.f32 %s345, 0.5
      %348 = vrot.lane.b32.xlu0 %v303, 124
      %v349 = vpop.permute.xlu0 %348
      %v351 = vsel %vm310, %v349, 0.0
      %352 = vadd.xlane.f32.xlu0 %v351
      %v353 = vpop.xlane.xlu0 %352
      %v354 = vrot.slane %v353, 4
      %v355 = vadd.f32 %v353, %v354
      %v356 = vrot.slane %v355, 2
      %v357 = vadd.f32 %v355, %v356
      %v358 = vrot.slane %v357, 1
      %v359 = vadd.f32 %v357, %v358
      %s360 = vtos %v359
      %s361 = ssub.f32 0.0, %s360
      %s362 = smul.f32 %s361, 0.5
      %v363 = vld [vmem:[%s15] sm:$0x3]
      %v364 = vmul.f32 %v363, %v363
      %vm365 = vcmask 254976
      %v366 = vsel %vm365, %v364, 0.0
      %367 = vadd.xlane.f32.xlu0 %v366
      %v368 = vpop.xlane.xlu0 %367
      %v369 = vrsqrt.pop %v368
      %v370 = vmul.f32 %v368, %v369
      %vm371 = vcmp.eq.f32.partialorder %v368, inf
      %v372 = vsel %vm371, %v368, %v370
      %vm373 = vcmp.eq.f32.partialorder %v368, 0.0
      %v374 = vand.u32 %v368, 2147483648
      %v375 = vsel %vm373, %v374, %v372
      %v376 = vld [vmem:[%s16] sm:$0x3]
      %v377 = vmul.f32 %v376, %v376
      %v378 = vsel %vm365, %v377, 0.0
      %379 = vadd.xlane.f32.xlu0 %v378
      %v380 = vpop.xlane.xlu0 %379
      %v381 = vrsqrt.pop %v380
      %v382 = vmul.f32 %v380, %v381
      %vm383 = vcmp.eq.f32.partialorder %v380, inf
      %v384 = vsel %vm383, %v380, %v382
      %vm385 = vcmp.eq.f32.partialorder %v380, 0.0
      %v386 = vand.u32 %v380, 2147483648
      %v387 = vsel %vm385, %v386, %v384
      %v388 = vld [vmem:[%s17] sm:$0x3]
      %v389 = vmul.f32 %v388, %v388
      %v390 = vsel %vm365, %v389, 0.0
      %391 = vadd.xlane.f32.xlu0 %v390
      %v392 = vpop.xlane.xlu0 %391
      %v393 = vrsqrt.pop %v392
      %v394 = vmul.f32 %v392, %v393
      %vm395 = vcmp.eq.f32.partialorder %v392, inf
      %v396 = vsel %vm395, %v392, %v394
      %vm397 = vcmp.eq.f32.partialorder %v392, 0.0
      %v398 = vand.u32 %v392, 2147483648
      %v399 = vsel %vm397, %v398, %v396
      %v400 = vsub.f32 50.0, %v375
      %v401 = vadd.f32 %v400, %v387
      %v402 = vmax.f32 %v401, 0.0
      %v403 = vsub.f32 50.0, %v387
      %v404 = vadd.f32 %v403, %v399
      %v405 = vmax.f32 %v404, 0.0
      %v406 = vadd.f32 %v402, %v405
      %v407 = vadd.f32 %v406, %v399
      %v408 = vmul.f32 %v407, %v407
      %v409 = vsel %vm310, %v408, 0.0
      %410 = vadd.xlane.f32.xlu0 %v409
      %v411 = vpop.xlane.xlu0 %410
      %v412 = vrot.slane %v411, 4
      %v413 = vadd.f32 %v411, %v412
      %v414 = vrot.slane %v413, 2
      %v415 = vadd.f32 %v413, %v414
      %v416 = vrot.slane %v415, 1
      %v417 = vadd.f32 %v415, %v416
      %s418 = vtos %v417
      %s419 = smul.f32 %s418, 0.5
      %s420 = scalar_lea.smem [#allocation5], 128
      %421 = sst [smem:[%s420]] %s322
      %s422 = scalar_lea.smem [#allocation5], 129
      %423 = sst [smem:[%s422]] %s346
      %s424 = scalar_lea.smem [#allocation5], 130
      %425 = sst [smem:[%s424]] %s362
      %s426 = scalar_lea.smem [#allocation5], 131
      %427 = sst [smem:[%s426]] %s271
      %s428 = scalar_lea.smem [#allocation5], 132
      %429 = sst [smem:[%s428]] %s419
      %s430 = scalar_lea.smem [#allocation5], 133
      %431 = sst [smem:[%s430]] %s283
    $region89: #{tpu_custom_call.1} parent=1 // pred_fallthru
      _
    // Predicated region
    $region90: #{tpu_custom_call.1} parent=1 // pred_check
      %p432 = pneg %p247
    $region91: #{tpu_custom_call.1} parent=1 // pred_check_branch
      %434 = sbr.rel (%p432) target = $region93
    $region92: #{tpu_custom_call.1} parent=1 // pred_region
      %s435 = sld [smem:[#allocation5 + $0x83]]
      %s436 = sadd.f32 %s435, %s271
      %s437 = scalar_lea.smem [#allocation5], 131
      %438 = sst [smem:[%s437]] %s436
      %s439 = sld [smem:[#allocation5 + $0x85]]
      %s440 = sadd.f32 %s439, %s283
      %s441 = scalar_lea.smem [#allocation5], 133
      %442 = sst [smem:[%s441]] %s440
    $region93: #{tpu_custom_call.1} parent=1 // pred_fallthru
      _
    // Predicated region
    $region94: #{tpu_custom_call.1} parent=1 // pred_check
      _
    $region95: #{tpu_custom_call.1} parent=1 // pred_check_branch
      %444 = sbr.rel (0) target = $region97
    $region96: #{tpu_custom_call.1} parent=1 // pred_region
      %s446 = ssub.s32 32, 32
      %447 = vsyncadd [#allocation4], %s446
      %450 = dma.smem_to_hbm [#allocation5], 32, %s18, [#allocation4]
    $region97: #{tpu_custom_call.1} parent=1 // pred_fallthru
      _
    // Predicated region
    $region98: #{tpu_custom_call.1} parent=1 // pred_check
      _
    $region99: #{tpu_custom_call.1} parent=1 // pred_check_branch
      %452 = sbr.rel (0) target = $region101
    $region100: #{tpu_custom_call.1} parent=1 // pred_region
      %453 = dma.done [#allocation4], 32
    $region101: #{tpu_custom_call.1} parent=1 // pred_fallthru
      _
    %454 = sfence
    %455 = vsyncpa [#allocation3], 1
    %456 = vsyncpa [#allocation4], 1

</llo_original>
